<compile_context>
chip_gen: v7x
topology: tpu7x:2x2x1
jax: 0.10.0
libtpu: 0.0.40
codegen_flags: <defaults>
</compile_context>

<pallas_src>
import functools
import math

import jax
import jax.numpy as jnp
from jax.experimental import pallas as pl
from jax.experimental.pallas import tpu as pltpu

_BF16 = jnp.bfloat16


# ------------------------------------------------------------------ kernels --

def _self_attn_kernel(x_ref, wq_ref, wk_ref, wv_ref, bq_ref, bk_ref, bv_ref,
                      o_ref):
    """One (batch, head) tile of self-attention.  Scale folded into wq/bq."""
    x = x_ref[0].astype(_BF16)                                     # (N, C)
    q = jnp.dot(x, wq_ref[0], preferred_element_type=jnp.float32) + bq_ref[0]
    k = jnp.dot(x, wk_ref[0], preferred_element_type=jnp.float32) + bk_ref[0]
    v = jnp.dot(x, wv_ref[0], preferred_element_type=jnp.float32) + bv_ref[0]
    s = jax.lax.dot_general(q.astype(_BF16), k.astype(_BF16),
                            (((1,), (1,)), ((), ())),
                            preferred_element_type=jnp.float32)    # (N, N)
    e = jnp.exp(s - jnp.max(s, axis=-1, keepdims=True))
    l = jnp.sum(e, axis=-1, keepdims=True)
    # Self-attention probs are never returned, so normalise the (N, Dh) output
    # instead of the (N, N) probs (fewer divides, still exact).
    o = jnp.dot(e.astype(_BF16), v.astype(_BF16),
                preferred_element_type=jnp.float32) / l
    o_ref[0, 0] = o.astype(o_ref.dtype)


def _cross_attn_kernel(xq_ref, xm_ref, wq_ref, wk_ref, wv_ref,
                       bq_ref, bk_ref, bv_ref, o_ref, p_ref):
    """One (batch, head) tile of cross-attention; also emits the probs."""
    xq = xq_ref[0].astype(_BF16)                                   # (N, C)
    xm = xm_ref[0].astype(_BF16)                                   # (M, C)
    q = jnp.dot(xq, wq_ref[0], preferred_element_type=jnp.float32) + bq_ref[0]
    k = jnp.dot(xm, wk_ref[0], preferred_element_type=jnp.float32) + bk_ref[0]
    v = jnp.dot(xm, wv_ref[0], preferred_element_type=jnp.float32) + bv_ref[0]
    s = jax.lax.dot_general(q.astype(_BF16), k.astype(_BF16),
                            (((1,), (1,)), ((), ())),
                            preferred_element_type=jnp.float32)    # (N, M)
    e = jnp.exp(s - jnp.max(s, axis=-1, keepdims=True))
    # Exact normalisation: these probs go back to the caller.
    p = e / jnp.sum(e, axis=-1, keepdims=True)
    p_ref[0, 0] = p
    o_ref[0, 0] = jnp.dot(p.astype(_BF16), v.astype(_BF16),
                          preferred_element_type=jnp.float32).astype(o_ref.dtype)


def _addnorm_ffn_kernel(hid_ref, res_ref, w_lin_ref, b_lin_ref, g1_ref, be1_ref,
                        w1_ref, b1_ref, w2_ref, b2_ref, g2_ref, be2_ref, o_ref,
                        *, eps, slope):
    """o = LN2(LReLU(LReLU(LN1(hid @ w_lin + b_lin + res) @ w1 + b1) @ w2 + b2))."""
    y = (jnp.dot(hid_ref[...], w_lin_ref[...],
                 preferred_element_type=jnp.float32)
         + b_lin_ref[...] + res_ref[...])
    mu = jnp.mean(y, axis=-1, keepdims=True)
    var = jnp.mean((y - mu) ** 2, axis=-1, keepdims=True)
    n = (y - mu) * jax.lax.rsqrt(var + eps) * g1_ref[...] + be1_ref[...]

    h = jnp.dot(n.astype(_BF16), w1_ref[...],
                preferred_element_type=jnp.float32) + b1_ref[...]
    h = jnp.where(h >= 0, h, slope * h)
    h = jnp.dot(h.astype(_BF16), w2_ref[...],
                preferred_element_type=jnp.float32) + b2_ref[...]
    h = jnp.where(h >= 0, h, slope * h)
    mu2 = jnp.mean(h, axis=-1, keepdims=True)
    var2 = jnp.mean((h - mu2) ** 2, axis=-1, keepdims=True)
    o_ref[...] = (h - mu2) * jax.lax.rsqrt(var2 + eps) * g2_ref[...] + be2_ref[...]


# ---------------------------------------------------------------- spec utils --

def _clamp_vmem(nbytes):
    # above v5e's 16 MiB default scoped limit, below v7x's 64 MiB physical VMEM
    return int(min(max(nbytes, 16 << 20), 64 << 20))


def _batch_spec(shape):
    return pl.BlockSpec(shape, lambda b, h: (b, 0, 0))


def _head_spec(shape):
    return pl.BlockSpec(shape, lambda b, h: (h, 0, 0))


def _const_spec(shape):
    # Constant block index across the whole grid -> a single buffer suffices.
    try:
        return pl.BlockSpec(shape, lambda i: (0, 0), pipeline_mode=pl.Buffered(1))
    except Exception:   # older jax without pipeline_mode / Buffered
        return pl.BlockSpec(shape, lambda i: (0, 0))


def _row_tile(R):
    if R <= 256:
        return R
    try:    # generation-aware: smaller row blocks on 64 MiB-VMEM parts (v7x)
        small_vmem = pltpu.get_tpu_info().vmem_capacity_bytes <= (64 << 20)
    except Exception:
        small_vmem = True
    return 256 if small_vmem else 512


# ------------------------------------------------------------------ wrappers --

def self_mha(p, x):
    # x: (B, N, C) -> (B, N, C); probs are discarded by the caller, not emitted.
    B, N, C = x.shape
    H, _, Dh = p["wq"].shape
    vmem = _clamp_vmem(2 * (N * C * 4 + 3 * C * Dh * 2 + N * Dh * 4) + (8 << 20))
    out = pl.pallas_call(
        _self_attn_kernel,
        grid=(B, H),
        out_shape=jax.ShapeDtypeStruct((B, H, N, Dh), jnp.float32),
        in_specs=[_batch_spec((1, N, C)),
                  _head_spec((1, C, Dh)), _head_spec((1, C, Dh)),
                  _head_spec((1, C, Dh)),
                  _head_spec((1, 1, Dh)), _head_spec((1, 1, Dh)),
                  _head_spec((1, 1, Dh))],
        out_specs=pl.BlockSpec((1, 1, N, Dh), lambda b, h: (b, h, 0, 0)),
        compiler_params=pltpu.CompilerParams(
            dimension_semantics=("parallel", "parallel"),
            vmem_limit_bytes=vmem),
    )(x, p["wq"], p["wk"], p["wv"], p["bq"], p["bk"], p["bv"])
    # (B, H, N, Dh) -> (B, N, C)  (cheap XLA relayout between kernels)
    return out.transpose(0, 2, 1, 3).reshape(B, N, C)


def cross_mha(p, x_q, x_mem):
    # x_q: (B, N, C), x_mem: (B, M, C) -> (hidden (B,N,C) bf16, probs (B,H,N,M))
    B, N, C = x_q.shape
    M = x_mem.shape[1]
    H, _, Dh = p["wq"].shape
    vmem = _clamp_vmem(2 * ((N + M) * C * 4 + 3 * C * Dh * 2
                            + N * Dh * 2 + N * M * 4) + (8 << 20))
    hid, probs = pl.pallas_call(
        _cross_attn_kernel,
        grid=(B, H),
        out_shape=(jax.ShapeDtypeStruct((B, H, N, Dh), _BF16),
                   jax.ShapeDtypeStruct((B, H, N, M), jnp.float32)),
        in_specs=[_batch_spec((1, N, C)), _batch_spec((1, M, C)),
                  _head_spec((1, C, Dh)), _head_spec((1, C, Dh)),
                  _head_spec((1, C, Dh)),
                  _head_spec((1, 1, Dh)), _head_spec((1, 1, Dh)),
                  _head_spec((1, 1, Dh))],
        out_specs=(pl.BlockSpec((1, 1, N, Dh), lambda b, h: (b, h, 0, 0)),
                   pl.BlockSpec((1, 1, N, M), lambda b, h: (b, h, 0, 0))),
        compiler_params=pltpu.CompilerParams(
            dimension_semantics=("parallel", "parallel"),
            vmem_limit_bytes=vmem),
    )(x_q, x_mem, p["wq"], p["wk"], p["wv"], p["bq"], p["bk"], p["bv"])
    return hid.transpose(0, 2, 1, 3).reshape(B, N, C), probs


def add_norm_ffn(p, hid, res, *, eps=1e-5, slope=0.2):
    # hid: (R, C) bf16, res: (R, C) f32 -> (R, C) f32
    R, C = hid.shape
    tm = _row_tile(R)
    row_hid = pl.BlockSpec((tm, C), lambda i: (i, 0))
    row_res = pl.BlockSpec((tm, C), lambda i: (i, 0))
    vmem = _clamp_vmem(
        2 * (tm * C * (2 + 4 + 4) + tm * 2 * C * 4)            # row tiles + intermediates
        + (C * C + 4 * C * C) * 2 + 8 * C * 4 + (4 << 20))     # bf16 weights (1 buffer) + vectors
    out = pl.pallas_call(
        functools.partial(_addnorm_ffn_kernel, eps=eps, slope=slope),
        grid=(pl.cdiv(R, tm),),
        out_shape=jax.ShapeDtypeStruct((R, C), jnp.float32),
        in_specs=[row_hid, row_res,
                  _const_spec((C, C)), _const_spec((1, C)),
                  _const_spec((1, C)), _const_spec((1, C)),
                  _const_spec((C, 2 * C)), _const_spec((1, 2 * C)),
                  _const_spec((2 * C, C)), _const_spec((1, C)),
                  _const_spec((1, C)), _const_spec((1, C))],
        out_specs=pl.BlockSpec((tm, C), lambda i: (i, 0)),
        compiler_params=pltpu.CompilerParams(
            dimension_semantics=("parallel",),
            vmem_limit_bytes=vmem),
    )(hid, res,
      p["w_lin"], p["b_lin"], p["g_norm"], p["beta_norm"],
      p["w1"], p["b1"], p["w2"], p["b2"], p["g_out"], p["beta_out"])
    return out


def cross_attention_forward(kp, input_states, memory_states):
    # TODO(synk): memory_weights / memory_masks / attention_factors /
    # attention_masks (None in the exercised reference call path) are not
    # threaded into the kernels.
    B, N, C = input_states.shape
    x = self_mha(kp["self_attention"], input_states)            # (B, N, C) f32
    hid, attn_scores = cross_mha(kp["attention"], x, memory_states)
    out = add_norm_ffn(kp, hid.reshape(B * N, C), x.reshape(B * N, C))
    return out.reshape(B, N, C), attn_scores


# -------------------------------------------- parameter init / kernel packing --

def _init_linear(key, cin, cout):
    k1, k2 = jax.random.split(key)
    bound = 1.0 / math.sqrt(cin)
    w = jax.random.uniform(k1, (cin, cout), jnp.float32, -bound, bound)
    b = jax.random.uniform(k2, (cout,), jnp.float32, -bound, bound)
    return w, b


def _init_mha(key, d_model):
    kq, kk, kv = jax.random.split(key, 3)
    wq, bq = _init_linear(kq, d_model, d_model)
    wk, bk = _init_linear(kk, d_model, d_model)
    wv, bv = _init_linear(kv, d_model, d_model)
    return dict(wq=wq, bq=bq, wk=wk, bk=bk, wv=wv, bv=bv)


def init_params(key, d_model):
    """Canonical f32 parameters mirroring the PyTorch module."""
    k_sa, k_ca, k_lin, k_w1, k_w2 = jax.random.split(key, 5)
    w_lin, b_lin = _init_linear(k_lin, d_model, d_model)
    w1, b1 = _init_linear(k_w1, d_model, 2 * d_model)
    w2, b2 = _init_linear(k_w2, 2 * d_model, d_model)
    return dict(
        self_attention=_init_mha(k_sa, d_model),
        attention=_init_mha(k_ca, d_model),
        w_lin=w_lin, b_lin=b_lin,
        g_norm=jnp.ones((d_model,), jnp.float32),
        beta_norm=jnp.zeros((d_model,), jnp.float32),
        w1=w1, b1=b1, w2=w2, b2=b2,
        g_out=jnp.ones((d_model,), jnp.float32),
        beta_out=jnp.zeros((d_model,), jnp.float32),
    )


def _split_heads_w(w, H):
    C, Cout = w.shape
    Dh = Cout // H
    return jnp.transpose(w.reshape(C, H, Dh), (1, 0, 2))        # (H, C, Dh)


def _split_heads_b(b, H):
    return b.reshape(H, 1, -1)                                  # (H, 1, Dh)


def _pack_mha(mha, H):
    Dh = mha["wq"].shape[1] // H
    scale = 1.0 / math.sqrt(Dh)          # fold 1/sqrt(Dh) into the q projection
    return dict(
        wq=_split_heads_w(mha["wq"] * scale, H).astype(_BF16),
        wk=_split_heads_w(mha["wk"], H).astype(_BF16),
        wv=_split_heads_w(mha["wv"], H).astype(_BF16),
        bq=_split_heads_b(mha["bq"] * scale, H),
        bk=_split_heads_b(mha["bk"], H),
        bv=_split_heads_b(mha["bv"], H),
    )


def pack_params(params, num_heads):
    """Kernel-ready params: per-head (H, C, Dh) bf16 weights, f32 biases/vectors."""
    return dict(
        self_attention=_pack_mha(params["self_attention"], num_heads),
        attention=_pack_mha(params["attention"], num_heads),
        w_lin=params["w_lin"].astype(_BF16), b_lin=params["b_lin"].reshape(1, -1),
        g_norm=params["g_norm"].reshape(1, -1),
        beta_norm=params["beta_norm"].reshape(1, -1),
        w1=params["w1"].astype(_BF16), b1=params["b1"].reshape(1, -1),
        w2=params["w2"].astype(_BF16), b2=params["b2"].reshape(1, -1),
        g_out=params["g_out"].reshape(1, -1),
        beta_out=params["beta_out"].reshape(1, -1),
    )


# --------------------------------------------------------- pure-JAX reference --

def reference_forward(params, x_in, mem, num_heads):
    def mha(p, xq, xkv):
        B, N, C = xq.shape
        M = xkv.shape[1]
        H, Dh = num_heads, C // num_heads
        q = (xq @ p["wq"] + p["bq"]).reshape(B, N, H, Dh).transpose(0, 2, 1, 3)
        k = (xkv @ p["wk"] + p["bk"]).reshape(B, M, H, Dh).transpose(0, 2, 1, 3)
        v = (xkv @ p["wv"] + p["bv"]).reshape(B, M, H, Dh).transpose(0, 2, 1, 3)
        s = jnp.einsum("bhnc,bhmc->bhnm", q, k) / math.sqrt(Dh)
        pr = jax.nn.softmax(s, axis=-1)
        o = jnp.einsum("bhnm,bhmc->bhnc", pr, v).transpose(0, 2, 1, 3).reshape(B, N, C)
        return o, pr

    def ln(v, g, b, eps=1e-5):
        mu = v.mean(-1, keepdims=True)
        var = ((v - mu) ** 2).mean(-1, keepdims=True)
        return (v - mu) / jnp.sqrt(var + eps) * g + b

    x, _ = mha(params["self_attention"], x_in, x_in)
    hid, scores = mha(params["attention"], x, mem)
    y = ln(hid @ params["w_lin"] + params["b_lin"] + x,
           params["g_norm"], params["beta_norm"])
    h = y @ params["w1"] + params["b1"]
    h = jnp.where(h >= 0, h, 0.2 * h)
    h = h @ params["w2"] + params["b2"]
    h = jnp.where(h >= 0, h, 0.2 * h)
    return ln(h, params["g_out"], params["beta_out"]), scores


if __name__ == "__main__":
    d_model, num_heads = 32, 4
    B, N, M = 2, 8, 8

    key = jax.random.PRNGKey(0)
    k_params, k_in, k_mem = jax.random.split(key, 3)
    params = init_params(k_params, d_model)
    kparams = pack_params(params, num_heads)
    input_states = jax.random.normal(k_in, (B, N, d_model), jnp.float32)
    memory_states = jax.random.normal(k_mem, (B, M, d_model), jnp.float32)

    fwd = jax.jit(cross_attention_forward)
    output_states, attention_scores = fwd(kparams, input_states, memory_states)
    jax.block_until_ready((output_states, attention_scores))

    assert output_states.shape == (B, N, d_model)
    assert attention_scores.shape == (B, num_heads, N, M)
    assert bool(jnp.all(jnp.isfinite(output_states)))
    assert bool(jnp.all(jnp.isfinite(attention_scores)))
    # exact softmax normalisation -> rows sum to 1 up to f32 rounding
    assert bool(jnp.allclose(attention_scores.sum(-1), 1.0, atol=1e-3))

    # compare against a pure-JAX f32 reference (kernels cast matmul operands to bf16)
    ref_out, ref_scores = reference_forward(params, input_states, memory_states,
                                            num_heads)
    assert float(jnp.max(jnp.abs(attention_scores - ref_scores))) < 3e-2
    assert float(jnp.max(jnp.abs(output_states - ref_out))) < 2e-1

    print("KERNEL_OK")
</pallas_src>

<mosaic_0001>
module attributes {stable_mosaic.version = 11 : i64} {
  func.func @_self_attn_kernel(%arg0: i32, %arg1: i32, %arg2: memref<1x8x32xf32, #tpu.memory_space<vmem>>, %arg3: memref<1x32x8xbf16, #tpu.memory_space<vmem>>, %arg4: memref<1x32x8xbf16, #tpu.memory_space<vmem>>, %arg5: memref<1x32x8xbf16, #tpu.memory_space<vmem>>, %arg6: memref<1x1x8xf32, #tpu.memory_space<vmem>>, %arg7: memref<1x1x8xf32, #tpu.memory_space<vmem>>, %arg8: memref<1x1x8xf32, #tpu.memory_space<vmem>>, %arg9: memref<1x1x8x8xf32, #tpu.memory_space<vmem>>) attributes {dimension_semantics = [#tpu.dimension_semantics<parallel>, #tpu.dimension_semantics<parallel>], iteration_bounds = array<i64: 2, 4>, scalar_prefetch = 0 : i64, scratch_operands = 0 : i64, tpu.core_type = #tpu.core_type<tc>, window_params = [{transform_indices = @transform_0, window_bounds = array<i64: 1, 8, 32>}, {transform_indices = @transform_1, window_bounds = array<i64: 1, 32, 8>}, {transform_indices = @transform_2, window_bounds = array<i64: 1, 32, 8>}, {transform_indices = @transform_3, window_bounds = array<i64: 1, 32, 8>}, {transform_indices = @transform_4, window_bounds = array<i64: 1, 1, 8>}, {transform_indices = @transform_5, window_bounds = array<i64: 1, 1, 8>}, {transform_indices = @transform_6, window_bounds = array<i64: 1, 1, 8>}, {transform_indices = @transform_7, window_bounds = array<i64: 1, 1, 8, 8>}]} {
    %c0 = arith.constant 0 : index
    %c0_0 = arith.constant 0 : index
    %c0_1 = arith.constant 0 : index
    %0 = vector.load %arg2[%c0, %c0_0, %c0_1] : memref<1x8x32xf32, #tpu.memory_space<vmem>>, vector<1x8x32xf32>
    %1 = vector.shape_cast %0 : vector<1x8x32xf32> to vector<8x32xf32>
    %2 = arith.truncf %1 : vector<8x32xf32> to vector<8x32xbf16>
    %c0_2 = arith.constant 0 : index
    %c0_3 = arith.constant 0 : index
    %c0_4 = arith.constant 0 : index
    %3 = vector.load %arg3[%c0_2, %c0_3, %c0_4] : memref<1x32x8xbf16, #tpu.memory_space<vmem>>, vector<1x32x8xbf16>
    %4 = vector.shape_cast %3 : vector<1x32x8xbf16> to vector<32x8xbf16>
    %cst = arith.constant dense<0.000000e+00> : vector<8x8xf32>
    %5 = tpu.matmul %2, %4, %cst {dimension_numbers = #tpu.dot_dimension_numbers<[1], [0], [0], [1], [0, 0, 1, 1], [], []>} : vector<8x32xbf16>, vector<32x8xbf16>, vector<8x8xf32> -> vector<8x8xf32>
    %c0_5 = arith.constant 0 : index
    %c0_6 = arith.constant 0 : index
    %c0_7 = arith.constant 0 : index
    %6 = vector.load %arg6[%c0_5, %c0_6, %c0_7] : memref<1x1x8xf32, #tpu.memory_space<vmem>>, vector<1x1x8xf32>
    %7 = vector.shape_cast %6 : vector<1x1x8xf32> to vector<1x8xf32>
    %8 = vector.broadcast %7 : vector<1x8xf32> to vector<8x8xf32>
    %9 = arith.addf %5, %8 : vector<8x8xf32>
    %c0_8 = arith.constant 0 : index
    %c0_9 = arith.constant 0 : index
    %c0_10 = arith.constant 0 : index
    %10 = vector.load %arg4[%c0_8, %c0_9, %c0_10] : memref<1x32x8xbf16, #tpu.memory_space<vmem>>, vector<1x32x8xbf16>
    %11 = vector.shape_cast %10 : vector<1x32x8xbf16> to vector<32x8xbf16>
    %cst_11 = arith.constant dense<0.000000e+00> : vector<8x8xf32>
    %12 = tpu.matmul %2, %11, %cst_11 {dimension_numbers = #tpu.dot_dimension_numbers<[1], [0], [0], [1], [0, 0, 1, 1], [], []>} : vector<8x32xbf16>, vector<32x8xbf16>, vector<8x8xf32> -> vector<8x8xf32>
    %c0_12 = arith.constant 0 : index
    %c0_13 = arith.constant 0 : index
    %c0_14 = arith.constant 0 : index
    %13 = vector.load %arg7[%c0_12, %c0_13, %c0_14] : memref<1x1x8xf32, #tpu.memory_space<vmem>>, vector<1x1x8xf32>
    %14 = vector.shape_cast %13 : vector<1x1x8xf32> to vector<1x8xf32>
    %15 = vector.broadcast %14 : vector<1x8xf32> to vector<8x8xf32>
    %16 = arith.addf %12, %15 : vector<8x8xf32>
    %c0_15 = arith.constant 0 : index
    %c0_16 = arith.constant 0 : index
    %c0_17 = arith.constant 0 : index
    %17 = vector.load %arg5[%c0_15, %c0_16, %c0_17] : memref<1x32x8xbf16, #tpu.memory_space<vmem>>, vector<1x32x8xbf16>
    %18 = vector.shape_cast %17 : vector<1x32x8xbf16> to vector<32x8xbf16>
    %cst_18 = arith.constant dense<0.000000e+00> : vector<8x8xf32>
    %19 = tpu.matmul %2, %18, %cst_18 {dimension_numbers = #tpu.dot_dimension_numbers<[1], [0], [0], [1], [0, 0, 1, 1], [], []>} : vector<8x32xbf16>, vector<32x8xbf16>, vector<8x8xf32> -> vector<8x8xf32>
    %c0_19 = arith.constant 0 : index
    %c0_20 = arith.constant 0 : index
    %c0_21 = arith.constant 0 : index
    %20 = vector.load %arg8[%c0_19, %c0_20, %c0_21] : memref<1x1x8xf32, #tpu.memory_space<vmem>>, vector<1x1x8xf32>
    %21 = vector.shape_cast %20 : vector<1x1x8xf32> to vector<1x8xf32>
    %22 = vector.broadcast %21 : vector<1x8xf32> to vector<8x8xf32>
    %23 = arith.addf %19, %22 : vector<8x8xf32>
    %24 = arith.truncf %9 : vector<8x8xf32> to vector<8x8xbf16>
    %25 = arith.truncf %16 : vector<8x8xf32> to vector<8x8xbf16>
    %cst_22 = arith.constant dense<0.000000e+00> : vector<8x8xf32>
    %26 = tpu.matmul %24, %25, %cst_22 {dimension_numbers = #tpu.dot_dimension_numbers<[1], [1], [0], [0], [0, 0, 1, 0], [], []>} : vector<8x8xbf16>, vector<8x8xbf16>, vector<8x8xf32> -> vector<8x8xf32>
    %cst_23 = arith.constant dense<0xFF800000> : vector<8xf32>
    %27 = vector.multi_reduction <maximumf>, %26, %cst_23 [1] : vector<8x8xf32> to vector<8xf32>
    %28 = vector.shape_cast %27 : vector<8xf32> to vector<8x1xf32>
    %29 = vector.broadcast %28 : vector<8x1xf32> to vector<8x8xf32>
    %30 = arith.subf %26, %29 : vector<8x8xf32>
    %31 = math.exp %30 : vector<8x8xf32>
    %cst_24 = arith.constant dense<0.000000e+00> : vector<8xf32>
    %32 = vector.multi_reduction <add>, %31, %cst_24 [1] : vector<8x8xf32> to vector<8xf32>
    %33 = vector.shape_cast %32 : vector<8xf32> to vector<8x1xf32>
    %34 = arith.truncf %31 : vector<8x8xf32> to vector<8x8xbf16>
    %35 = arith.truncf %23 : vector<8x8xf32> to vector<8x8xbf16>
    %cst_25 = arith.constant dense<0.000000e+00> : vector<8x8xf32>
    %36 = tpu.matmul %34, %35, %cst_25 {dimension_numbers = #tpu.dot_dimension_numbers<[1], [0], [0], [1], [0, 0, 1, 1], [], []>} : vector<8x8xbf16>, vector<8x8xbf16>, vector<8x8xf32> -> vector<8x8xf32>
    %37 = vector.broadcast %33 : vector<8x1xf32> to vector<8x8xf32>
    %38 = arith.divf %36, %37 : vector<8x8xf32>
    %c0_26 = arith.constant 0 : index
    %c0_27 = arith.constant 0 : index
    %c0_28 = arith.constant 0 : index
    %c0_29 = arith.constant 0 : index
    %39 = vector.load %arg9[%c0_26, %c0_27, %c0_28, %c0_29] : memref<1x1x8x8xf32, #tpu.memory_space<vmem>>, vector<1x1x8x8xf32>
    %40 = vector.shape_cast %39 : vector<1x1x8x8xf32> to vector<8x8xf32>
    %41 = vector.shape_cast %38 : vector<8x8xf32> to vector<1x1x8x8xf32>
    tpu.vector_store %arg9[%c0_26, %c0_27, %c0_28, %c0_29], %41 {strides = array<i32>} : memref<1x1x8x8xf32, #tpu.memory_space<vmem>>, vector<1x1x8x8xf32>,
    return
  }
  func.func @transform_0(%arg0: i32, %arg1: i32) -> (i32, i32, i32) {
    %c0_i32 = arith.constant 0 : i32
    %c0_i32_0 = arith.constant 0 : i32
    %c0_i32_1 = arith.constant 0 : i32
    return %arg0, %c0_i32, %c0_i32_0 : i32, i32, i32
  }
  func.func @transform_1(%arg0: i32, %arg1: i32) -> (i32, i32, i32) {
    %c0_i32 = arith.constant 0 : i32
    %c0_i32_0 = arith.constant 0 : i32
    %c0_i32_1 = arith.constant 0 : i32
    return %arg1, %c0_i32, %c0_i32_0 : i32, i32, i32
  }
  func.func @transform_2(%arg0: i32, %arg1: i32) -> (i32, i32, i32) {
    %c0_i32 = arith.constant 0 : i32
    %c0_i32_0 = arith.constant 0 : i32
    %c0_i32_1 = arith.constant 0 : i32
    return %arg1, %c0_i32, %c0_i32_0 : i32, i32, i32
  }
  func.func @transform_3(%arg0: i32, %arg1: i32) -> (i32, i32, i32) {
    %c0_i32 = arith.constant 0 : i32
    %c0_i32_0 = arith.constant 0 : i32
    %c0_i32_1 = arith.constant 0 : i32
    return %arg1, %c0_i32, %c0_i32_0 : i32, i32, i32
  }
  func.func @transform_4(%arg0: i32, %arg1: i32) -> (i32, i32, i32) {
    %c0_i32 = arith.constant 0 : i32
    %c0_i32_0 = arith.constant 0 : i32
    %c0_i32_1 = arith.constant 0 : i32
    return %arg1, %c0_i32, %c0_i32_0 : i32, i32, i32
  }
  func.func @transform_5(%arg0: i32, %arg1: i32) -> (i32, i32, i32) {
    %c0_i32 = arith.constant 0 : i32
    %c0_i32_0 = arith.constant 0 : i32
    %c0_i32_1 = arith.constant 0 : i32
    return %arg1, %c0_i32, %c0_i32_0 : i32, i32, i32
  }
  func.func @transform_6(%arg0: i32, %arg1: i32) -> (i32, i32, i32) {
    %c0_i32 = arith.constant 0 : i32
    %c0_i32_0 = arith.constant 0 : i32
    %c0_i32_1 = arith.constant 0 : i32
    return %arg1, %c0_i32, %c0_i32_0 : i32, i32, i32
  }
  func.func @transform_7(%arg0: i32, %arg1: i32) -> (i32, i32, i32, i32) {
    %c0_i32 = arith.constant 0 : i32
    %c0_i32_0 = arith.constant 0 : i32
    %c0_i32_1 = arith.constant 0 : i32
    return %arg0, %arg1, %c0_i32, %c0_i32_0 : i32, i32, i32, i32
  }
}

module attributes {stable_mosaic.version = 11 : i64} {
  func.func @_cross_attn_kernel(%arg0: i32, %arg1: i32, %arg2: memref<1x8x32xf32, #tpu.memory_space<vmem>>, %arg3: memref<1x8x32xf32, #tpu.memory_space<vmem>>, %arg4: memref<1x32x8xbf16, #tpu.memory_space<vmem>>, %arg5: memref<1x32x8xbf16, #tpu.memory_space<vmem>>, %arg6: memref<1x32x8xbf16, #tpu.memory_space<vmem>>, %arg7: memref<1x1x8xf32, #tpu.memory_space<vmem>>, %arg8: memref<1x1x8xf32, #tpu.memory_space<vmem>>, %arg9: memref<1x1x8xf32, #tpu.memory_space<vmem>>, %arg10: memref<1x1x8x8xbf16, #tpu.memory_space<vmem>>, %arg11: memref<1x1x8x8xf32, #tpu.memory_space<vmem>>) attributes {dimension_semantics = [#tpu.dimension_semantics<parallel>, #tpu.dimension_semantics<parallel>], iteration_bounds = array<i64: 2, 4>, scalar_prefetch = 0 : i64, scratch_operands = 0 : i64, tpu.core_type = #tpu.core_type<tc>, window_params = [{transform_indices = @transform_0, window_bounds = array<i64: 1, 8, 32>}, {transform_indices = @transform_1, window_bounds = array<i64: 1, 8, 32>}, {transform_indices = @transform_2, window_bounds = array<i64: 1, 32, 8>}, {transform_indices = @transform_3, window_bounds = array<i64: 1, 32, 8>}, {transform_indices = @transform_4, window_bounds = array<i64: 1, 32, 8>}, {transform_indices = @transform_5, window_bounds = array<i64: 1, 1, 8>}, {transform_indices = @transform_6, window_bounds = array<i64: 1, 1, 8>}, {transform_indices = @transform_7, window_bounds = array<i64: 1, 1, 8>}, {transform_indices = @transform_8, window_bounds = array<i64: 1, 1, 8, 8>}, {transform_indices = @transform_9, window_bounds = array<i64: 1, 1, 8, 8>}]} {
    %c0 = arith.constant 0 : index
    %c0_0 = arith.constant 0 : index
    %c0_1 = arith.constant 0 : index
    %0 = vector.load %arg2[%c0, %c0_0, %c0_1] : memref<1x8x32xf32, #tpu.memory_space<vmem>>, vector<1x8x32xf32>
    %1 = vector.shape_cast %0 : vector<1x8x32xf32> to vector<8x32xf32>
    %2 = arith.truncf %1 : vector<8x32xf32> to vector<8x32xbf16>
    %c0_2 = arith.constant 0 : index
    %c0_3 = arith.constant 0 : index
    %c0_4 = arith.constant 0 : index
    %3 = vector.load %arg3[%c0_2, %c0_3, %c0_4] : memref<1x8x32xf32, #tpu.memory_space<vmem>>, vector<1x8x32xf32>
    %4 = vector.shape_cast %3 : vector<1x8x32xf32> to vector<8x32xf32>
    %5 = arith.truncf %4 : vector<8x32xf32> to vector<8x32xbf16>
    %c0_5 = arith.constant 0 : index
    %c0_6 = arith.constant 0 : index
    %c0_7 = arith.constant 0 : index
    %6 = vector.load %arg4[%c0_5, %c0_6, %c0_7] : memref<1x32x8xbf16, #tpu.memory_space<vmem>>, vector<1x32x8xbf16>
    %7 = vector.shape_cast %6 : vector<1x32x8xbf16> to vector<32x8xbf16>
    %cst = arith.constant dense<0.000000e+00> : vector<8x8xf32>
    %8 = tpu.matmul %2, %7, %cst {dimension_numbers = #tpu.dot_dimension_numbers<[1], [0], [0], [1], [0, 0, 1, 1], [], []>} : vector<8x32xbf16>, vector<32x8xbf16>, vector<8x8xf32> -> vector<8x8xf32>
    %c0_8 = arith.constant 0 : index
    %c0_9 = arith.constant 0 : index
    %c0_10 = arith.constant 0 : index
    %9 = vector.load %arg7[%c0_8, %c0_9, %c0_10] : memref<1x1x8xf32, #tpu.memory_space<vmem>>, vector<1x1x8xf32>
    %10 = vector.shape_cast %9 : vector<1x1x8xf32> to vector<1x8xf32>
    %11 = vector.broadcast %10 : vector<1x8xf32> to vector<8x8xf32>
    %12 = arith.addf %8, %11 : vector<8x8xf32>
    %c0_11 = arith.constant 0 : index
    %c0_12 = arith.constant 0 : index
    %c0_13 = arith.constant 0 : index
    %13 = vector.load %arg5[%c0_11, %c0_12, %c0_13] : memref<1x32x8xbf16, #tpu.memory_space<vmem>>, vector<1x32x8xbf16>
    %14 = vector.shape_cast %13 : vector<1x32x8xbf16> to vector<32x8xbf16>
    %cst_14 = arith.constant dense<0.000000e+00> : vector<8x8xf32>
    %15 = tpu.matmul %5, %14, %cst_14 {dimension_numbers = #tpu.dot_dimension_numbers<[1], [0], [0], [1], [0, 0, 1, 1], [], []>} : vector<8x32xbf16>, vector<32x8xbf16>, vector<8x8xf32> -> vector<8x8xf32>
    %c0_15 = arith.constant 0 : index
    %c0_16 = arith.constant 0 : index
    %c0_17 = arith.constant 0 : index
    %16 = vector.load %arg8[%c0_15, %c0_16, %c0_17] : memref<1x1x8xf32, #tpu.memory_space<vmem>>, vector<1x1x8xf32>
    %17 = vector.shape_cast %16 : vector<1x1x8xf32> to vector<1x8xf32>
    %18 = vector.broadcast %17 : vector<1x8xf32> to vector<8x8xf32>
    %19 = arith.addf %15, %18 : vector<8x8xf32>
    %c0_18 = arith.constant 0 : index
    %c0_19 = arith.constant 0 : index
    %c0_20 = arith.constant 0 : index
    %20 = vector.load %arg6[%c0_18, %c0_19, %c0_20] : memref<1x32x8xbf16, #tpu.memory_space<vmem>>, vector<1x32x8xbf16>
    %21 = vector.shape_cast %20 : vector<1x32x8xbf16> to vector<32x8xbf16>
    %cst_21 = arith.constant dense<0.000000e+00> : vector<8x8xf32>
    %22 = tpu.matmul %5, %21, %cst_21 {dimension_numbers = #tpu.dot_dimension_numbers<[1], [0], [0], [1], [0, 0, 1, 1], [], []>} : vector<8x32xbf16>, vector<32x8xbf16>, vector<8x8xf32> -> vector<8x8xf32>
    %c0_22 = arith.constant 0 : index
    %c0_23 = arith.constant 0 : index
    %c0_24 = arith.constant 0 : index
    %23 = vector.load %arg9[%c0_22, %c0_23, %c0_24] : memref<1x1x8xf32, #tpu.memory_space<vmem>>, vector<1x1x8xf32>
    %24 = vector.shape_cast %23 : vector<1x1x8xf32> to vector<1x8xf32>
    %25 = vector.broadcast %24 : vector<1x8xf32> to vector<8x8xf32>
    %26 = arith.addf %22, %25 : vector<8x8xf32>
    %27 = arith.truncf %12 : vector<8x8xf32> to vector<8x8xbf16>
    %28 = arith.truncf %19 : vector<8x8xf32> to vector<8x8xbf16>
    %cst_25 = arith.constant dense<0.000000e+00> : vector<8x8xf32>
    %29 = tpu.matmul %27, %28, %cst_25 {dimension_numbers = #tpu.dot_dimension_numbers<[1], [1], [0], [0], [0, 0, 1, 0], [], []>} : vector<8x8xbf16>, vector<8x8xbf16>, vector<8x8xf32> -> vector<8x8xf32>
    %cst_26 = arith.constant dense<0xFF800000> : vector<8xf32>
    %30 = vector.multi_reduction <maximumf>, %29, %cst_26 [1] : vector<8x8xf32> to vector<8xf32>
    %31 = vector.shape_cast %30 : vector<8xf32> to vector<8x1xf32>
    %32 = vector.broadcast %31 : vector<8x1xf32> to vector<8x8xf32>
    %33 = arith.subf %29, %32 : vector<8x8xf32>
    %34 = math.exp %33 : vector<8x8xf32>
    %cst_27 = arith.constant dense<0.000000e+00> : vector<8xf32>
    %35 = vector.multi_reduction <add>, %34, %cst_27 [1] : vector<8x8xf32> to vector<8xf32>
    %36 = vector.shape_cast %35 : vector<8xf32> to vector<8x1xf32>
    %37 = vector.broadcast %36 : vector<8x1xf32> to vector<8x8xf32>
    %38 = arith.divf %34, %37 : vector<8x8xf32>
    %c0_28 = arith.constant 0 : index
    %c0_29 = arith.constant 0 : index
    %c0_30 = arith.constant 0 : index
    %c0_31 = arith.constant 0 : index
    %39 = vector.load %arg11[%c0_28, %c0_29, %c0_30, %c0_31] : memref<1x1x8x8xf32, #tpu.memory_space<vmem>>, vector<1x1x8x8xf32>
    %40 = vector.shape_cast %39 : vector<1x1x8x8xf32> to vector<8x8xf32>
    %41 = vector.shape_cast %38 : vector<8x8xf32> to vector<1x1x8x8xf32>
    tpu.vector_store %arg11[%c0_28, %c0_29, %c0_30, %c0_31], %41 {strides = array<i32>} : memref<1x1x8x8xf32, #tpu.memory_space<vmem>>, vector<1x1x8x8xf32>,
    %42 = arith.truncf %38 : vector<8x8xf32> to vector<8x8xbf16>
    %43 = arith.truncf %26 : vector<8x8xf32> to vector<8x8xbf16>
    %cst_32 = arith.constant dense<0.000000e+00> : vector<8x8xf32>
    %44 = tpu.matmul %42, %43, %cst_32 {dimension_numbers = #tpu.dot_dimension_numbers<[1], [0], [0], [1], [0, 0, 1, 1], [], []>} : vector<8x8xbf16>, vector<8x8xbf16>, vector<8x8xf32> -> vector<8x8xf32>
    %45 = arith.truncf %44 : vector<8x8xf32> to vector<8x8xbf16>
    %c0_33 = arith.constant 0 : index
    %c0_34 = arith.constant 0 : index
    %c0_35 = arith.constant 0 : index
    %c0_36 = arith.constant 0 : index
    %46 = vector.load %arg10[%c0_33, %c0_34, %c0_35, %c0_36] : memref<1x1x8x8xbf16, #tpu.memory_space<vmem>>, vector<1x1x8x8xbf16>
    %47 = vector.shape_cast %46 : vector<1x1x8x8xbf16> to vector<8x8xbf16>
    %48 = vector.shape_cast %45 : vector<8x8xbf16> to vector<1x1x8x8xbf16>
    tpu.vector_store %arg10[%c0_33, %c0_34, %c0_35, %c0_36], %48 {strides = array<i32>} : memref<1x1x8x8xbf16, #tpu.memory_space<vmem>>, vector<1x1x8x8xbf16>,
    return
  }
  func.func @transform_0(%arg0: i32, %arg1: i32) -> (i32, i32, i32) {
    %c0_i32 = arith.constant 0 : i32
    %c0_i32_0 = arith.constant 0 : i32
    %c0_i32_1 = arith.constant 0 : i32
    return %arg0, %c0_i32, %c0_i32_0 : i32, i32, i32
  }
  func.func @transform_1(%arg0: i32, %arg1: i32) -> (i32, i32, i32) {
    %c0_i32 = arith.constant 0 : i32
    %c0_i32_0 = arith.constant 0 : i32
    %c0_i32_1 = arith.constant 0 : i32
    return %arg0, %c0_i32, %c0_i32_0 : i32, i32, i32
  }
  func.func @transform_2(%arg0: i32, %arg1: i32) -> (i32, i32, i32) {
    %c0_i32 = arith.constant 0 : i32
    %c0_i32_0 = arith.constant 0 : i32
    %c0_i32_1 = arith.constant 0 : i32
    return %arg1, %c0_i32, %c0_i32_0 : i32, i32, i32
  }
  func.func @transform_3(%arg0: i32, %arg1: i32) -> (i32, i32, i32) {
    %c0_i32 = arith.constant 0 : i32
    %c0_i32_0 = arith.constant 0 : i32
    %c0_i32_1 = arith.constant 0 : i32
    return %arg1, %c0_i32, %c0_i32_0 : i32, i32, i32
  }
  func.func @transform_4(%arg0: i32, %arg1: i32) -> (i32, i32, i32) {
    %c0_i32 = arith.constant 0 : i32
    %c0_i32_0 = arith.constant 0 : i32
    %c0_i32_1 = arith.constant 0 : i32
    return %arg1, %c0_i32, %c0_i32_0 : i32, i32, i32
  }
  func.func @transform_5(%arg0: i32, %arg1: i32) -> (i32, i32, i32) {
    %c0_i32 = arith.constant 0 : i32
    %c0_i32_0 = arith.constant 0 : i32
    %c0_i32_1 = arith.constant 0 : i32
    return %arg1, %c0_i32, %c0_i32_0 : i32, i32, i32
  }
  func.func @transform_6(%arg0: i32, %arg1: i32) -> (i32, i32, i32) {
    %c0_i32 = arith.constant 0 : i32
    %c0_i32_0 = arith.constant 0 : i32
    %c0_i32_1 = arith.constant 0 : i32
    return %arg1, %c0_i32, %c0_i32_0 : i32, i32, i32
  }
  func.func @transform_7(%arg0: i32, %arg1: i32) -> (i32, i32, i32) {
    %c0_i32 = arith.constant 0 : i32
    %c0_i32_0 = arith.constant 0 : i32
    %c0_i32_1 = arith.constant 0 : i32
    return %arg1, %c0_i32, %c0_i32_0 : i32, i32, i32
  }
  func.func @transform_8(%arg0: i32, %arg1: i32) -> (i32, i32, i32, i32) {
    %c0_i32 = arith.constant 0 : i32
    %c0_i32_0 = arith.constant 0 : i32
    %c0_i32_1 = arith.constant 0 : i32
    return %arg0, %arg1, %c0_i32, %c0_i32_0 : i32, i32, i32, i32
  }
  func.func @transform_9(%arg0: i32, %arg1: i32) -> (i32, i32, i32, i32) {
    %c0_i32 = arith.constant 0 : i32
    %c0_i32_0 = arith.constant 0 : i32
    %c0_i32_1 = arith.constant 0 : i32
    return %arg0, %arg1, %c0_i32, %c0_i32_0 : i32, i32, i32, i32
  }
}

module attributes {stable_mosaic.version = 11 : i64} {
  func.func @_addnorm_ffn_kernel(%arg0: i32, %arg1: memref<16x32xbf16, #tpu.memory_space<vmem>>, %arg2: memref<16x32xf32, #tpu.memory_space<vmem>>, %arg3: memref<32x32xbf16, #tpu.memory_space<vmem>>, %arg4: memref<1x32xf32, #tpu.memory_space<vmem>>, %arg5: memref<1x32xf32, #tpu.memory_space<vmem>>, %arg6: memref<1x32xf32, #tpu.memory_space<vmem>>, %arg7: memref<32x64xbf16, #tpu.memory_space<vmem>>, %arg8: memref<1x64xf32, #tpu.memory_space<vmem>>, %arg9: memref<64x32xbf16, #tpu.memory_space<vmem>>, %arg10: memref<1x32xf32, #tpu.memory_space<vmem>>, %arg11: memref<1x32xf32, #tpu.memory_space<vmem>>, %arg12: memref<1x32xf32, #tpu.memory_space<vmem>>, %arg13: memref<16x32xf32, #tpu.memory_space<vmem>>) attributes {dimension_semantics = [#tpu.dimension_semantics<parallel>], iteration_bounds = array<i64: 1>, scalar_prefetch = 0 : i64, scratch_operands = 0 : i64, tpu.core_type = #tpu.core_type<tc>, window_params = [{transform_indices = @transform_0, window_bounds = array<i64: 16, 32>}, {transform_indices = @transform_1, window_bounds = array<i64: 16, 32>}, {pipeline_mode = #tpu.pipeline_mode<synchronous>, transform_indices = @transform_2, window_bounds = array<i64: 32, 32>}, {pipeline_mode = #tpu.pipeline_mode<synchronous>, transform_indices = @transform_3, window_bounds = array<i64: 1, 32>}, {pipeline_mode = #tpu.pipeline_mode<synchronous>, transform_indices = @transform_4, window_bounds = array<i64: 1, 32>}, {pipeline_mode = #tpu.pipeline_mode<synchronous>, transform_indices = @transform_5, window_bounds = array<i64: 1, 32>}, {pipeline_mode = #tpu.pipeline_mode<synchronous>, transform_indices = @transform_6, window_bounds = array<i64: 32, 64>}, {pipeline_mode = #tpu.pipeline_mode<synchronous>, transform_indices = @transform_7, window_bounds = array<i64: 1, 64>}, {pipeline_mode = #tpu.pipeline_mode<synchronous>, transform_indices = @transform_8, window_bounds = array<i64: 64, 32>}, {pipeline_mode = #tpu.pipeline_mode<synchronous>, transform_indices = @transform_9, window_bounds = array<i64: 1, 32>}, {pipeline_mode = #tpu.pipeline_mode<synchronous>, transform_indices = @transform_10, window_bounds = array<i64: 1, 32>}, {pipeline_mode = #tpu.pipeline_mode<synchronous>, transform_indices = @transform_11, window_bounds = array<i64: 1, 32>}, {transform_indices = @transform_12, window_bounds = array<i64: 16, 32>}]} {
    %c0 = arith.constant 0 : index
    %c0_0 = arith.constant 0 : index
    %0 = vector.load %arg1[%c0, %c0_0] : memref<16x32xbf16, #tpu.memory_space<vmem>>, vector<16x32xbf16>
    %c0_1 = arith.constant 0 : index
    %c0_2 = arith.constant 0 : index
    %1 = vector.load %arg3[%c0_1, %c0_2] : memref<32x32xbf16, #tpu.memory_space<vmem>>, vector<32x32xbf16>
    %cst = arith.constant dense<0.000000e+00> : vector<16x32xf32>
    %2 = tpu.matmul %0, %1, %cst {dimension_numbers = #tpu.dot_dimension_numbers<[1], [0], [0], [1], [0, 0, 1, 1], [], []>} : vector<16x32xbf16>, vector<32x32xbf16>, vector<16x32xf32> -> vector<16x32xf32>
    %c0_3 = arith.constant 0 : index
    %c0_4 = arith.constant 0 : index
    %3 = vector.load %arg4[%c0_3, %c0_4] : memref<1x32xf32, #tpu.memory_space<vmem>>, vector<1x32xf32>
    %4 = vector.broadcast %3 : vector<1x32xf32> to vector<16x32xf32>
    %5 = arith.addf %2, %4 : vector<16x32xf32>
    %c0_5 = arith.constant 0 : index
    %c0_6 = arith.constant 0 : index
    %6 = vector.load %arg2[%c0_5, %c0_6] : memref<16x32xf32, #tpu.memory_space<vmem>>, vector<16x32xf32>
    %7 = arith.addf %5, %6 : vector<16x32xf32>
    %cst_7 = arith.constant dense<0.000000e+00> : vector<16xf32>
    %8 = vector.multi_reduction <add>, %7, %cst_7 [1] : vector<16x32xf32> to vector<16xf32>
    %9 = vector.shape_cast %8 : vector<16xf32> to vector<16x1xf32>
    %cst_8 = arith.constant 3.200000e+01 : f32
    %10 = vector.broadcast %cst_8 : f32 to vector<16x1xf32>
    %11 = arith.divf %9, %10 : vector<16x1xf32>
    %12 = vector.broadcast %11 : vector<16x1xf32> to vector<16x32xf32>
    %13 = arith.subf %7, %12 : vector<16x32xf32>
    %14 = arith.mulf %13, %13 : vector<16x32xf32>
    %cst_9 = arith.constant dense<0.000000e+00> : vector<16xf32>
    %15 = vector.multi_reduction <add>, %14, %cst_9 [1] : vector<16x32xf32> to vector<16xf32>
    %16 = vector.shape_cast %15 : vector<16xf32> to vector<16x1xf32>
    %cst_10 = arith.constant 3.200000e+01 : f32
    %17 = vector.broadcast %cst_10 : f32 to vector<16x1xf32>
    %18 = arith.divf %16, %17 : vector<16x1xf32>
    %19 = vector.broadcast %11 : vector<16x1xf32> to vector<16x32xf32>
    %20 = arith.subf %7, %19 : vector<16x32xf32>
    %cst_11 = arith.constant 9.99999974E-6 : f32
    %21 = vector.broadcast %cst_11 : f32 to vector<16x1xf32>
    %22 = arith.addf %18, %21 : vector<16x1xf32>
    %23 = math.rsqrt %22 : vector<16x1xf32>
    %24 = vector.broadcast %23 : vector<16x1xf32> to vector<16x32xf32>
    %25 = arith.mulf %20, %24 : vector<16x32xf32>
    %c0_12 = arith.constant 0 : index
    %c0_13 = arith.constant 0 : index
    %26 = vector.load %arg5[%c0_12, %c0_13] : memref<1x32xf32, #tpu.memory_space<vmem>>, vector<1x32xf32>
    %27 = vector.broadcast %26 : vector<1x32xf32> to vector<16x32xf32>
    %28 = arith.mulf %25, %27 : vector<16x32xf32>
    %c0_14 = arith.constant 0 : index
    %c0_15 = arith.constant 0 : index
    %29 = vector.load %arg6[%c0_14, %c0_15] : memref<1x32xf32, #tpu.memory_space<vmem>>, vector<1x32xf32>
    %30 = vector.broadcast %29 : vector<1x32xf32> to vector<16x32xf32>
    %31 = arith.addf %28, %30 : vector<16x32xf32>
    %32 = arith.truncf %31 : vector<16x32xf32> to vector<16x32xbf16>
    %c0_16 = arith.constant 0 : index
    %c0_17 = arith.constant 0 : index
    %33 = vector.load %arg7[%c0_16, %c0_17] : memref<32x64xbf16, #tpu.memory_space<vmem>>, vector<32x64xbf16>
    %cst_18 = arith.constant dense<0.000000e+00> : vector<16x64xf32>
    %34 = tpu.matmul %32, %33, %cst_18 {dimension_numbers = #tpu.dot_dimension_numbers<[1], [0], [0], [1], [0, 0, 1, 1], [], []>} : vector<16x32xbf16>, vector<32x64xbf16>, vector<16x64xf32> -> vector<16x64xf32>
    %c0_19 = arith.constant 0 : index
    %c0_20 = arith.constant 0 : index
    %35 = vector.load %arg8[%c0_19, %c0_20] : memref<1x64xf32, #tpu.memory_space<vmem>>, vector<1x64xf32>
    %36 = vector.broadcast %35 : vector<1x64xf32> to vector<16x64xf32>
    %37 = arith.addf %34, %36 : vector<16x64xf32>
    %cst_21 = arith.constant 0.000000e+00 : f32
    %38 = vector.broadcast %cst_21 : f32 to vector<16x64xf32>
    %39 = arith.cmpf oge, %37, %38 : vector<16x64xf32>
    %cst_22 = arith.constant 2.000000e-01 : f32
    %40 = vector.broadcast %cst_22 : f32 to vector<16x64xf32>
    %41 = arith.mulf %40, %37 : vector<16x64xf32>
    %42 = arith.select %39, %37, %41 : vector<16x64xi1>, vector<16x64xf32>
    %43 = arith.truncf %42 : vector<16x64xf32> to vector<16x64xbf16>
    %c0_23 = arith.constant 0 : index
    %c0_24 = arith.constant 0 : index
    %44 = vector.load %arg9[%c0_23, %c0_24] : memref<64x32xbf16, #tpu.memory_space<vmem>>, vector<64x32xbf16>
    %cst_25 = arith.constant dense<0.000000e+00> : vector<16x32xf32>
    %45 = tpu.matmul %43, %44, %cst_25 {dimension_numbers = #tpu.dot_dimension_numbers<[1], [0], [0], [1], [0, 0, 1, 1], [], []>} : vector<16x64xbf16>, vector<64x32xbf16>, vector<16x32xf32> -> vector<16x32xf32>
    %c0_26 = arith.constant 0 : index
    %c0_27 = arith.constant 0 : index
    %46 = vector.load %arg10[%c0_26, %c0_27] : memref<1x32xf32, #tpu.memory_space<vmem>>, vector<1x32xf32>
    %47 = vector.broadcast %46 : vector<1x32xf32> to vector<16x32xf32>
    %48 = arith.addf %45, %47 : vector<16x32xf32>
    %cst_28 = arith.constant 0.000000e+00 : f32
    %49 = vector.broadcast %cst_28 : f32 to vector<16x32xf32>
    %50 = arith.cmpf oge, %48, %49 : vector<16x32xf32>
    %cst_29 = arith.constant 2.000000e-01 : f32
    %51 = vector.broadcast %cst_29 : f32 to vector<16x32xf32>
    %52 = arith.mulf %51, %48 : vector<16x32xf32>
    %53 = arith.select %50, %48, %52 : vector<16x32xi1>, vector<16x32xf32>
    %cst_30 = arith.constant dense<0.000000e+00> : vector<16xf32>
    %54 = vector.multi_reduction <add>, %53, %cst_30 [1] : vector<16x32xf32> to vector<16xf32>
    %55 = vector.shape_cast %54 : vector<16xf32> to vector<16x1xf32>
    %cst_31 = arith.constant 3.200000e+01 : f32
    %56 = vector.broadcast %cst_31 : f32 to vector<16x1xf32>
    %57 = arith.divf %55, %56 : vector<16x1xf32>
    %58 = vector.broadcast %57 : vector<16x1xf32> to vector<16x32xf32>
    %59 = arith.subf %53, %58 : vector<16x32xf32>
    %60 = arith.mulf %59, %59 : vector<16x32xf32>
    %cst_32 = arith.constant dense<0.000000e+00> : vector<16xf32>
    %61 = vector.multi_reduction <add>, %60, %cst_32 [1] : vector<16x32xf32> to vector<16xf32>
    %62 = vector.shape_cast %61 : vector<16xf32> to vector<16x1xf32>
    %cst_33 = arith.constant 3.200000e+01 : f32
    %63 = vector.broadcast %cst_33 : f32 to vector<16x1xf32>
    %64 = arith.divf %62, %63 : vector<16x1xf32>
    %65 = vector.broadcast %57 : vector<16x1xf32> to vector<16x32xf32>
    %66 = arith.subf %53, %65 : vector<16x32xf32>
    %cst_34 = arith.constant 9.99999974E-6 : f32
    %67 = vector.broadcast %cst_34 : f32 to vector<16x1xf32>
    %68 = arith.addf %64, %67 : vector<16x1xf32>
    %69 = math.rsqrt %68 : vector<16x1xf32>
    %70 = vector.broadcast %69 : vector<16x1xf32> to vector<16x32xf32>
    %71 = arith.mulf %66, %70 : vector<16x32xf32>
    %c0_35 = arith.constant 0 : index
    %c0_36 = arith.constant 0 : index
    %72 = vector.load %arg11[%c0_35, %c0_36] : memref<1x32xf32, #tpu.memory_space<vmem>>, vector<1x32xf32>
    %73 = vector.broadcast %72 : vector<1x32xf32> to vector<16x32xf32>
    %74 = arith.mulf %71, %73 : vector<16x32xf32>
    %c0_37 = arith.constant 0 : index
    %c0_38 = arith.constant 0 : index
    %75 = vector.load %arg12[%c0_37, %c0_38] : memref<1x32xf32, #tpu.memory_space<vmem>>, vector<1x32xf32>
    %76 = vector.broadcast %75 : vector<1x32xf32> to vector<16x32xf32>
    %77 = arith.addf %74, %76 : vector<16x32xf32>
    %c0_39 = arith.constant 0 : index
    %c0_40 = arith.constant 0 : index
    %78 = vector.load %arg13[%c0_39, %c0_40] : memref<16x32xf32, #tpu.memory_space<vmem>>, vector<16x32xf32>
    tpu.vector_store %arg13[%c0_39, %c0_40], %77 {strides = array<i32>} : memref<16x32xf32, #tpu.memory_space<vmem>>, vector<16x32xf32>,
    return
  }
  func.func @transform_0(%arg0: i32) -> (i32, i32) {
    %c0_i32 = arith.constant 0 : i32
    %c0_i32_0 = arith.constant 0 : i32
    return %arg0, %c0_i32 : i32, i32
  }
  func.func @transform_1(%arg0: i32) -> (i32, i32) {
    %c0_i32 = arith.constant 0 : i32
    %c0_i32_0 = arith.constant 0 : i32
    return %arg0, %c0_i32 : i32, i32
  }
  func.func @transform_2(%arg0: i32) -> (i32, i32) {
    %c0_i32 = arith.constant 0 : i32
    %c0_i32_0 = arith.constant 0 : i32
    %c0_i32_1 = arith.constant 0 : i32
    return %c0_i32, %c0_i32_0 : i32, i32
  }
  func.func @transform_3(%arg0: i32) -> (i32, i32) {
    %c0_i32 = arith.constant 0 : i32
    %c0_i32_0 = arith.constant 0 : i32
    %c0_i32_1 = arith.constant 0 : i32
    return %c0_i32, %c0_i32_0 : i32, i32
  }
  func.func @transform_4(%arg0: i32) -> (i32, i32) {
    %c0_i32 = arith.constant 0 : i32
    %c0_i32_0 = arith.constant 0 : i32
    %c0_i32_1 = arith.constant 0 : i32
    return %c0_i32, %c0_i32_0 : i32, i32
  }
  func.func @transform_5(%arg0: i32) -> (i32, i32) {
    %c0_i32 = arith.constant 0 : i32
    %c0_i32_0 = arith.constant 0 : i32
    %c0_i32_1 = arith.constant 0 : i32
    return %c0_i32, %c0_i32_0 : i32, i32
  }
  func.func @transform_6(%arg0: i32) -> (i32, i32) {
    %c0_i32 = arith.constant 0 : i32
    %c0_i32_0 = arith.constant 0 : i32
    %c0_i32_1 = arith.constant 0 : i32
    return %c0_i32, %c0_i32_0 : i32, i32
  }
  func.func @transform_7(%arg0: i32) -> (i32, i32) {
    %c0_i32 = arith.constant 0 : i32
    %c0_i32_0 = arith.constant 0 : i32
    %c0_i32_1 = arith.constant 0 : i32
    return %c0_i32, %c0_i32_0 : i32, i32
  }
  func.func @transform_8(%arg0: i32) -> (i32, i32) {
    %c0_i32 = arith.constant 0 : i32
    %c0_i32_0 = arith.constant 0 : i32
    %c0_i32_1 = arith.constant 0 : i32
    return %c0_i32, %c0_i32_0 : i32, i32
  }
  func.func @transform_9(%arg0: i32) -> (i32, i32) {
    %c0_i32 = arith.constant 0 : i32
    %c0_i32_0 = arith.constant 0 : i32
    %c0_i32_1 = arith.constant 0 : i32
    return %c0_i32, %c0_i32_0 : i32, i32
  }
  func.func @transform_10(%arg0: i32) -> (i32, i32) {
    %c0_i32 = arith.constant 0 : i32
    %c0_i32_0 = arith.constant 0 : i32
    %c0_i32_1 = arith.constant 0 : i32
    return %c0_i32, %c0_i32_0 : i32, i32
  }
  func.func @transform_11(%arg0: i32) -> (i32, i32) {
    %c0_i32 = arith.constant 0 : i32
    %c0_i32_0 = arith.constant 0 : i32
    %c0_i32_1 = arith.constant 0 : i32
    return %c0_i32, %c0_i32_0 : i32, i32
  }
  func.func @transform_12(%arg0: i32) -> (i32, i32) {
    %c0_i32 = arith.constant 0 : i32
    %c0_i32_0 = arith.constant 0 : i32
    return %arg0, %c0_i32 : i32, i32
  }
}

</mosaic_0001>

<llo_original>
// kernel: cross_attention_forward.3
$region0: #{cross_attention_forward.3}
  #allocation0 [shape = 'u32[]', space=smem, size = 0x4, offset = 0x4, fixed_abs, tag = 'smem constant byte address 0x4 - core index']
  #allocation1 [shape = 'u32[144,128]{1,0:T(1,128)}', space=vmem, size = 0x12000, scoped, tag = 'internal scratch']
  %s0 = inlined_call_operand.vmem [shape: f32[2,8,32], index: 0, kind: input, shape index: {}]
  %s1 = inlined_call_operand.vmem [shape: bf16[4,32,8], index: 1, kind: input, shape index: {}]
  %s2 = inlined_call_operand.vmem [shape: bf16[4,32,8], index: 2, kind: input, shape index: {}]
  %s3 = inlined_call_operand.vmem [shape: bf16[4,32,8], index: 3, kind: input, shape index: {}]
  %s4 = inlined_call_operand.vmem [shape: f32[4,1,8], index: 4, kind: input, shape index: {}]
  %s5 = inlined_call_operand.vmem [shape: f32[4,1,8], index: 5, kind: input, shape index: {}]
  %s6 = inlined_call_operand.vmem [shape: f32[4,1,8], index: 6, kind: input, shape index: {}]
  %s7 = inlined_call_operand.vmem [shape: f32[2,4,8,8], index: 7, kind: output, shape index: {}]
  %s8 = sld [smem:[#allocation0]]
  $region61: #{cross_attention_forward.3} parent=0
    _
  %s10 = ssub.s32 1, %s8
  %s11 = scalar_select 0, %s10, %s8
  loop: start=0, step=1, limit=10
  $region2: #{cross_attention_forward.3} parent=0 // loop_pre_header
    _
  $region3: #{cross_attention_forward.3} parent=0 // loop_header
    %s13 = sphi 0, %s17
    %p14 = scmp.ge.s32.totalorder %s13, 10
    %s20 = sphi 0, %s32
    %s21 = sphi 0, %s28
    %s22 = sphi 0, %s20
    %s23 = sphi 0, %s21
    %s24 = sphi 0, %s22
    %s25 = sphi 0, %s23
    %s35 = sphi 0, %s37
    %s38 = sphi 0, %s35
    %s39 = sphi 0, %s38
    %s55 = sphi 0, %s39
    %s61 = sphi 0, %s63
    %s64 = sphi 0, %s61
    %s65 = sphi 0, %s64
    %s81 = sphi 0, %s65
    %s87 = sphi 0, %s89
    %s90 = sphi 0, %s87
    %s91 = sphi 0, %s90
    %s107 = sphi 0, %s91
    %s113 = sphi 0, %s115
    %s116 = sphi 0, %s113
    %s117 = sphi 0, %s116
    %s133 = sphi 0, %s117
    %s139 = sphi 0, %s141
    %s142 = sphi 0, %s139
    %s143 = sphi 0, %s142
    %s159 = sphi 0, %s143
    %s165 = sphi 0, %s167
    %s168 = sphi 0, %s165
    %s169 = sphi 0, %s168
    %s185 = sphi 0, %s169
    %s191 = sphi 0, %s193
    %s194 = sphi 0, %s191
    %s195 = sphi 0, %s194
    %s211 = sphi 0, %s195
    %s219 = sphi 0, %s221
    %s222 = sphi 0, %s219
    %s223 = sphi 0, %s222
    %s239 = sphi 0, %s223
  $region4: #{cross_attention_forward.3} parent=0 // loop_header_branch
    %16 = sbr.rel (%p14) target = $region8
  $region5: #{cross_attention_forward.3} parent=0 // loop_body
    %s18 = ssub.s32 %s13, 1
    %s19 = ssub.s32 %s13, 2
    %s26 = sadd.s32 1, %s21
    %p27 = scmp.ge.s32.totalorder %s26, 4
    %s28 = scalar_select %p27, 0, %s26
    %s29 = sadd.s32 1, %s20
    %s30 = scalar_select %p27, %s29, %s20
    %p31 = scmp.ge.s32.totalorder %s30, 2
    %s32 = scalar_select %p31, 0, %s30
    %s33 = ssub.s32 %s20, %s32
    %p34 = scmp.eq.s32.totalorder %s33, 0
    %s36 = sadd.s32 %s35, 1
    %s37 = scalar_select %p34, %s35, %s36
    %p40 = pneg %p34
    %p41 = scmp.eq.s32.totalorder %s13, 7
    %p42 = por %p40, %p41
    %p43 = scmp.ne.s32.totalorder %s35, %s38
    %p44 = scmp.eq.s32.totalorder %s13, 0
    %p45 = por %p43, %p44
    %p46 = scmp.ne.s32.totalorder %s35, %s38
    %p47 = scmp.eq.s32.totalorder %s18, 7
    %p48 = por %p46, %p47
    %p49 = scmp.ne.s32.totalorder %s38, %s39
    %p50 = scmp.eq.s32.totalorder %s18, 0
    %p51 = por %p49, %p50
    %p52 = scmp.ne.s32.totalorder %s38, %s39
    %p53 = scmp.eq.s32.totalorder %s19, 7
    %p54 = por %p52, %p53
    %p56 = scmp.ne.s32.totalorder %s39, %s55
    %p57 = scmp.eq.s32.totalorder %s19, 0
    %p58 = por %p56, %p57
    %s59 = ssub.s32 %s21, %s28
    %p60 = scmp.eq.s32.totalorder %s59, 0
    %s62 = sadd.s32 %s61, 1
    %s63 = scalar_select %p60, %s61, %s62
    %p66 = pneg %p60
    %p67 = scmp.eq.s32.totalorder %s13, 7
    %p68 = por %p66, %p67
    %p69 = scmp.ne.s32.totalorder %s61, %s64
    %p70 = scmp.eq.s32.totalorder %s13, 0
    %p71 = por %p69, %p70
    %p72 = scmp.ne.s32.totalorder %s61, %s64
    %p73 = scmp.eq.s32.totalorder %s18, 7
    %p74 = por %p72, %p73
    %p75 = scmp.ne.s32.totalorder %s64, %s65
    %p76 = scmp.eq.s32.totalorder %s18, 0
    %p77 = por %p75, %p76
    %p78 = scmp.ne.s32.totalorder %s64, %s65
    %p79 = scmp.eq.s32.totalorder %s19, 7
    %p80 = por %p78, %p79
    %p82 = scmp.ne.s32.totalorder %s65, %s81
    %p83 = scmp.eq.s32.totalorder %s19, 0
    %p84 = por %p82, %p83
    %s85 = ssub.s32 %s21, %s28
    %p86 = scmp.eq.s32.totalorder %s85, 0
    %s88 = sadd.s32 %s87, 1
    %s89 = scalar_select %p86, %s87, %s88
    %p92 = pneg %p86
    %p93 = scmp.eq.s32.totalorder %s13, 7
    %p94 = por %p92, %p93
    %p95 = scmp.ne.s32.totalorder %s87, %s90
    %p96 = scmp.eq.s32.totalorder %s13, 0
    %p97 = por %p95, %p96
    %p98 = scmp.ne.s32.totalorder %s87, %s90
    %p99 = scmp.eq.s32.totalorder %s18, 7
    %p100 = por %p98, %p99
    %p101 = scmp.ne.s32.totalorder %s90, %s91
    %p102 = scmp.eq.s32.totalorder %s18, 0
    %p103 = por %p101, %p102
    %p104 = scmp.ne.s32.totalorder %s90, %s91
    %p105 = scmp.eq.s32.totalorder %s19, 7
    %p106 = por %p104, %p105
    %p108 = scmp.ne.s32.totalorder %s91, %s107
    %p109 = scmp.eq.s32.totalorder %s19, 0
    %p110 = por %p108, %p109
    %s111 = ssub.s32 %s21, %s28
    %p112 = scmp.eq.s32.totalorder %s111, 0
    %s114 = sadd.s32 %s113, 1
    %s115 = scalar_select %p112, %s113, %s114
    %p118 = pneg %p112
    %p119 = scmp.eq.s32.totalorder %s13, 7
    %p120 = por %p118, %p119
    %p121 = scmp.ne.s32.totalorder %s113, %s116
    %p122 = scmp.eq.s32.totalorder %s13, 0
    %p123 = por %p121, %p122
    %p124 = scmp.ne.s32.totalorder %s113, %s116
    %p125 = scmp.eq.s32.totalorder %s18, 7
    %p126 = por %p124, %p125
    %p127 = scmp.ne.s32.totalorder %s116, %s117
    %p128 = scmp.eq.s32.totalorder %s18, 0
    %p129 = por %p127, %p128
    %p130 = scmp.ne.s32.totalorder %s116, %s117
    %p131 = scmp.eq.s32.totalorder %s19, 7
    %p132 = por %p130, %p131
    %p134 = scmp.ne.s32.totalorder %s117, %s133
    %p135 = scmp.eq.s32.totalorder %s19, 0
    %p136 = por %p134, %p135
    %s137 = ssub.s32 %s21, %s28
    %p138 = scmp.eq.s32.totalorder %s137, 0
    %s140 = sadd.s32 %s139, 1
    %s141 = scalar_select %p138, %s139, %s140
    %p144 = pneg %p138
    %p145 = scmp.eq.s32.totalorder %s13, 7
    %p146 = por %p144, %p145
    %p147 = scmp.ne.s32.totalorder %s139, %s142
    %p148 = scmp.eq.s32.totalorder %s13, 0
    %p149 = por %p147, %p148
    %p150 = scmp.ne.s32.totalorder %s139, %s142
    %p151 = scmp.eq.s32.totalorder %s18, 7
    %p152 = por %p150, %p151
    %p153 = scmp.ne.s32.totalorder %s142, %s143
    %p154 = scmp.eq.s32.totalorder %s18, 0
    %p155 = por %p153, %p154
    %p156 = scmp.ne.s32.totalorder %s142, %s143
    %p157 = scmp.eq.s32.totalorder %s19, 7
    %p158 = por %p156, %p157
    %p160 = scmp.ne.s32.totalorder %s143, %s159
    %p161 = scmp.eq.s32.totalorder %s19, 0
    %p162 = por %p160, %p161
    %s163 = ssub.s32 %s21, %s28
    %p164 = scmp.eq.s32.totalorder %s163, 0
    %s166 = sadd.s32 %s165, 1
    %s167 = scalar_select %p164, %s165, %s166
    %p170 = pneg %p164
    %p171 = scmp.eq.s32.totalorder %s13, 7
    %p172 = por %p170, %p171
    %p173 = scmp.ne.s32.totalorder %s165, %s168
    %p174 = scmp.eq.s32.totalorder %s13, 0
    %p175 = por %p173, %p174
    %p176 = scmp.ne.s32.totalorder %s165, %s168
    %p177 = scmp.eq.s32.totalorder %s18, 7
    %p178 = por %p176, %p177
    %p179 = scmp.ne.s32.totalorder %s168, %s169
    %p180 = scmp.eq.s32.totalorder %s18, 0
    %p181 = por %p179, %p180
    %p182 = scmp.ne.s32.totalorder %s168, %s169
    %p183 = scmp.eq.s32.totalorder %s19, 7
    %p184 = por %p182, %p183
    %p186 = scmp.ne.s32.totalorder %s169, %s185
    %p187 = scmp.eq.s32.totalorder %s19, 0
    %p188 = por %p186, %p187
    %s189 = ssub.s32 %s21, %s28
    %p190 = scmp.eq.s32.totalorder %s189, 0
    %s192 = sadd.s32 %s191, 1
    %s193 = scalar_select %p190, %s191, %s192
    %p196 = pneg %p190
    %p197 = scmp.eq.s32.totalorder %s13, 7
    %p198 = por %p196, %p197
    %p199 = scmp.ne.s32.totalorder %s191, %s194
    %p200 = scmp.eq.s32.totalorder %s13, 0
    %p201 = por %p199, %p200
    %p202 = scmp.ne.s32.totalorder %s191, %s194
    %p203 = scmp.eq.s32.totalorder %s18, 7
    %p204 = por %p202, %p203
    %p205 = scmp.ne.s32.totalorder %s194, %s195
    %p206 = scmp.eq.s32.totalorder %s18, 0
    %p207 = por %p205, %p206
    %p208 = scmp.ne.s32.totalorder %s194, %s195
    %p209 = scmp.eq.s32.totalorder %s19, 7
    %p210 = por %p208, %p209
    %p212 = scmp.ne.s32.totalorder %s195, %s211
    %p213 = scmp.eq.s32.totalorder %s19, 0
    %p214 = por %p212, %p213
    %s215 = ssub.s32 %s20, %s32
    %s216 = ssub.s32 %s21, %s28
    %s217 = sor.u32 %s215, %s216
    %p218 = scmp.eq.s32.totalorder %s217, 0
    %s220 = sadd.s32 %s219, 1
    %s221 = scalar_select %p218, %s219, %s220
    %p224 = pneg %p218
    %p225 = scmp.eq.s32.totalorder %s13, 7
    %p226 = por %p224, %p225
    %p227 = scmp.ne.s32.totalorder %s219, %s222
    %p228 = scmp.eq.s32.totalorder %s13, 0
    %p229 = por %p227, %p228
    %p230 = scmp.ne.s32.totalorder %s219, %s222
    %p231 = scmp.eq.s32.totalorder %s18, 7
    %p232 = por %p230, %p231
    %p233 = scmp.ne.s32.totalorder %s222, %s223
    %p234 = scmp.eq.s32.totalorder %s18, 0
    %p235 = por %p233, %p234
    %p236 = scmp.ne.s32.totalorder %s222, %s223
    %p237 = scmp.eq.s32.totalorder %s19, 7
    %p238 = por %p236, %p237
    %p240 = scmp.ne.s32.totalorder %s223, %s239
    %p241 = scmp.eq.s32.totalorder %s19, 0
    %p242 = por %p240, %p241
    %p243 = scmp.le.s32.totalorder 1, %s13
    %p244 = scmp.lt.s32.totalorder %s13, 9
    %p245 = pnand %p243, %p244
    %p246 = pneg %p245
    // Predicated region
    $region9: #{cross_attention_forward.3} parent=5 // pred_check
      _
    $region10: #{cross_attention_forward.3} parent=5 // pred_check_branch
      %248 = sbr.rel (%p245) target = $region12
    $region11: #{cross_attention_forward.3} parent=5 // pred_region
      %s249 = ssub.s32 %s13, 1
    $region12: #{cross_attention_forward.3} parent=5 // pred_fallthru
      _
    %p250 = scmp.lt.s32.totalorder %s13, 8
    // Predicated region
    $region13: #{cross_attention_forward.3} parent=5 // pred_check
      %p251 = pneg %p250
    $region14: #{cross_attention_forward.3} parent=5 // pred_check_branch
      %253 = sbr.rel (%p251) target = $region16
    $region15: #{cross_attention_forward.3} parent=5 // pred_region
      // Predicated region
      $region17: #{cross_attention_forward.3} parent=15 // pred_check
        %p254 = pneg %p45
      $region18: #{cross_attention_forward.3} parent=15 // pred_check_branch
        %256 = sbr.rel (%p254) target = $region20
      $region19: #{cross_attention_forward.3} parent=15 // pred_region
        %p257 = scmp.lt.s32.totalorder %s20, 1
        %s258 = scalar_select %p257, %s20, 1
        %s259 = smul.addr %s258, 8
        %s260 = scalar_lea.vmem %s0, %s259
      $region20: #{cross_attention_forward.3} parent=15 // pred_fallthru
        _
      // Predicated region
      $region21: #{cross_attention_forward.3} parent=15 // pred_check
        %p261 = pneg %p71
      $region22: #{cross_attention_forward.3} parent=15 // pred_check_branch
        %263 = sbr.rel (%p261) target = $region24
      $region23: #{cross_attention_forward.3} parent=15 // pred_region
        %p264 = scmp.lt.s32.totalorder %s21, 3
        %s265 = scalar_select %p264, %s21, 3
        %s266 = smul.addr %s265, 4
        %s267 = smul.addr %s266, 4
        %s268 = scalar_lea.vmem %s1, %s267
      $region24: #{cross_attention_forward.3} parent=15 // pred_fallthru
        _
      // Predicated region
      $region25: #{cross_attention_forward.3} parent=15 // pred_check
        %p269 = pneg %p97
      $region26: #{cross_attention_forward.3} parent=15 // pred_check_branch
        %271 = sbr.rel (%p269) target = $region28
      $region27: #{cross_attention_forward.3} parent=15 // pred_region
        %p272 = scmp.lt.s32.totalorder %s21, 3
        %s273 = scalar_select %p272, %s21, 3
        %s274 = smul.addr %s273, 4
        %s275 = smul.addr %s274, 4
        %s276 = scalar_lea.vmem %s2, %s275
      $region28: #{cross_attention_forward.3} parent=15 // pred_fallthru
        _
      // Predicated region
      $region29: #{cross_attention_forward.3} parent=15 // pred_check
        %p277 = pneg %p123
      $region30: #{cross_attention_forward.3} parent=15 // pred_check_branch
        %279 = sbr.rel (%p277) target = $region32
      $region31: #{cross_attention_forward.3} parent=15 // pred_region
        %p280 = scmp.lt.s32.totalorder %s21, 3
        %s281 = scalar_select %p280, %s21, 3
        %s282 = smul.addr %s281, 4
        %s283 = smul.addr %s282, 4
        %s284 = scalar_lea.vmem %s3, %s283
      $region32: #{cross_attention_forward.3} parent=15 // pred_fallthru
        _
      // Predicated region
      $region33: #{cross_attention_forward.3} parent=15 // pred_check
        %p285 = pneg %p149
      $region34: #{cross_attention_forward.3} parent=15 // pred_check_branch
        %287 = sbr.rel (%p285) target = $region36
      $region35: #{cross_attention_forward.3} parent=15 // pred_region
        %p288 = scmp.lt.s32.totalorder %s21, 3
        %s289 = scalar_select %p288, %s21, 3
        %s290 = scalar_lea.vmem %s4, %s289
      $region36: #{cross_attention_forward.3} parent=15 // pred_fallthru
        _
      // Predicated region
      $region37: #{cross_attention_forward.3} parent=15 // pred_check
        %p291 = pneg %p175
      $region38: #{cross_attention_forward.3} parent=15 // pred_check_branch
        %293 = sbr.rel (%p291) target = $region40
      $region39: #{cross_attention_forward.3} parent=15 // pred_region
        %p294 = scmp.lt.s32.totalorder %s21, 3
        %s295 = scalar_select %p294, %s21, 3
        %s296 = scalar_lea.vmem %s5, %s295
      $region40: #{cross_attention_forward.3} parent=15 // pred_fallthru
        _
      // Predicated region
      $region41: #{cross_attention_forward.3} parent=15 // pred_check
        %p297 = pneg %p201
      $region42: #{cross_attention_forward.3} parent=15 // pred_check_branch
        %299 = sbr.rel (%p297) target = $region44
      $region43: #{cross_attention_forward.3} parent=15 // pred_region
        %p300 = scmp.lt.s32.totalorder %s21, 3
        %s301 = scalar_select %p300, %s21, 3
        %s302 = scalar_lea.vmem %s6, %s301
      $region44: #{cross_attention_forward.3} parent=15 // pred_fallthru
        _
    $region16: #{cross_attention_forward.3} parent=5 // pred_fallthru
      _
    %p303 = scmp.le.s32.totalorder 1, %s13
    %p304 = scmp.lt.s32.totalorder %s13, 9
    %p305 = pnand %p303, %p304
    %p306 = pneg %p305
    // Predicated region
    $region45: #{cross_attention_forward.3} parent=5 // pred_check
      _
    $region46: #{cross_attention_forward.3} parent=5 // pred_check_branch
      %308 = sbr.rel (%p305) target = $region48
    $region47: #{cross_attention_forward.3} parent=5 // pred_region
      %s309 = ssub.s32 %s13, 1
      %p310 = scmp.lt.s32.totalorder %s22, 1
      %s311 = scalar_select %p310, %s22, 1
      %s312 = smul.addr %s311, 8
      %s313 = scalar_lea.vmem %s0, %s312
      %p314 = pneg %p51
      %p315 = pneg %p48
      %p316 = scmp.lt.s32.totalorder %s23, 3
      %s317 = scalar_select %p316, %s23, 3
      %s318 = smul.addr %s317, 4
      %s319 = smul.addr %s318, 4
      %s320 = scalar_lea.vmem %s1, %s319
      %p321 = pneg %p77
      %p322 = pneg %p74
      %p323 = scmp.lt.s32.totalorder %s23, 3
      %s324 = scalar_select %p323, %s23, 3
      %s325 = smul.addr %s324, 4
      %s326 = smul.addr %s325, 4
      %s327 = scalar_lea.vmem %s2, %s326
      %p328 = pneg %p103
      %p329 = pneg %p100
      %p330 = scmp.lt.s32.totalorder %s23, 3
      %s331 = scalar_select %p330, %s23, 3
      %s332 = smul.addr %s331, 4
      %s333 = smul.addr %s332, 4
      %s334 = scalar_lea.vmem %s3, %s333
      %p335 = pneg %p129
      %p336 = pneg %p126
      %p337 = scmp.lt.s32.totalorder %s23, 3
      %s338 = scalar_select %p337, %s23, 3
      %s339 = scalar_lea.vmem %s4, %s338
      %p340 = pneg %p155
      %p341 = pneg %p152
      %p342 = scmp.lt.s32.totalorder %s23, 3
      %s343 = scalar_select %p342, %s23, 3
      %s344 = scalar_lea.vmem %s5, %s343
      %p345 = pneg %p181
      %p346 = pneg %p178
      %p347 = scmp.lt.s32.totalorder %s23, 3
      %s348 = scalar_select %p347, %s23, 3
      %s349 = scalar_lea.vmem %s6, %s348
      %p350 = pneg %p207
      %p351 = pneg %p204
      %p352 = pneg %p235
      %p353 = pneg %p232
      %p354 = scmp.lt.s32.totalorder %s22, 1
      %s355 = scalar_select %p354, %s22, 1
      %p356 = scmp.lt.s32.totalorder %s23, 3
      %s357 = scalar_select %p356, %s23, 3
      %s358 = smul.addr %s355, 4
      %s359 = sadd.s32 %s357, %s358
      %s360 = smul.addr %s359, 8
      %s361 = scalar_lea.vmem %s7, %s360
      %p362 = scmp.lt.s32.totalorder %s22, 1
      %s363 = scalar_select %p362, %s22, 1
      %s364 = smul.addr %s363, 8
      %s365 = scalar_lea.vmem %s0, %s364
      %p366 = scmp.lt.s32.totalorder %s23, 3
      %s367 = scalar_select %p366, %s23, 3
      %s368 = smul.addr %s367, 4
      %s369 = smul.addr %s368, 4
      %s370 = scalar_lea.vmem %s1, %s369
      %p371 = scmp.lt.s32.totalorder %s23, 3
      %s372 = scalar_select %p371, %s23, 3
      %s373 = smul.addr %s372, 4
      %s374 = smul.addr %s373, 4
      %s375 = scalar_lea.vmem %s2, %s374
      %p376 = scmp.lt.s32.totalorder %s23, 3
      %s377 = scalar_select %p376, %s23, 3
      %s378 = smul.addr %s377, 4
      %s379 = smul.addr %s378, 4
      %s380 = scalar_lea.vmem %s3, %s379
      %p381 = scmp.lt.s32.totalorder %s23, 3
      %s382 = scalar_select %p381, %s23, 3
      %s383 = scalar_lea.vmem %s4, %s382
      %p384 = scmp.lt.s32.totalorder %s23, 3
      %s385 = scalar_select %p384, %s23, 3
      %s386 = scalar_lea.vmem %s5, %s385
      %p387 = scmp.lt.s32.totalorder %s23, 3
      %s388 = scalar_select %p387, %s23, 3
      %s389 = scalar_lea.vmem %s6, %s388
      %p390 = scmp.lt.s32.totalorder %s22, 1
      %s391 = scalar_select %p390, %s22, 1
      %p392 = scmp.lt.s32.totalorder %s23, 3
      %s393 = scalar_select %p392, %s23, 3
      %s394 = smul.addr %s391, 4
      %s395 = sadd.s32 %s393, %s394
      %s396 = smul.addr %s395, 8
      %s397 = scalar_lea.vmem %s7, %s396
      %v399 = vld [vmem:[%s365] sm:$0xff]
      %v400 = vpack.c.bf16 %v399, %v399
      %v401 = vld [vmem:[%s370] sm:$0xf]
      %v402 = vld [vmem:[%s370 + $0x4] sm:$0xf]
      %v403 = vld [vmem:[%s370 + $0x8] sm:$0xf]
      %v404 = vld [vmem:[%s370 + $0xc] sm:$0xf]
      %v405 = vld [vmem:[%s383] sm:$0x1]
      %v407 = vlaneseq
      %v408 = vshrl.u32 %v407, 7
      %v409 = vsub.s32 0, %v408
      %v410 = vrot.slane %v405, %v409
      %v416 = vunpack.c.l.b16 %v401
      %v417 = vunpack.c.l.b16 %v402
      %v418 = vunpack.c.l.b16 %v403
      %v419 = vunpack.c.l.b16 %v404
      %v420 = vpack.c.b16 %v417, %v416
      %v421 = vpack.c.b16 %v419, %v418
      %vm424 = vcmask 261120
      %v426 = vsel %vm424, %v400, 0
      %428 = vmatprep.subr.bf16.mxu0 0
      %429 = vmatpush1.bf16.msra.mxu0 %v420
      %430 = vmatprep.subr.bf16.mxu0 0
      %431 = vmatpush1.bf16.msra.mxu0 %v421
      %432 = vmatprep.subr.bf16.mxu0 0
      %433 = vmatpush1.bf16.msra.mxu0 0
      %434 = vmatprep.subr.bf16.mxu0 0
      %435 = vmatpush1.bf16.msra.mxu0 0
      %436 = vmatprep.subr.bf16.mxu0 0
      %437 = vmatpush1.bf16.msra.mxu0 0
      %438 = vmatprep.subr.bf16.mxu0 0
      %439 = vmatpush1.bf16.msra.mxu0 0
      %440 = vmatprep.subr.bf16.mxu0 0
      %441 = vmatpush1.bf16.msra.mxu0 0
      %442 = vmatprep.subr.bf16.mxu0 0
      %443 = vmatpush1.bf16.msra.mxu0 0
      %444 = vmatprep.subr.bf16.mxu0 0
      %445 = vmatpush1.bf16.msra.mxu0 0
      %446 = vmatprep.subr.bf16.mxu0 0
      %447 = vmatpush1.bf16.msra.mxu0 0
      %448 = vmatprep.subr.bf16.mxu0 0
      %449 = vmatpush1.bf16.msra.mxu0 0
      %450 = vmatprep.subr.bf16.mxu0 0
      %451 = vmatpush1.bf16.msra.mxu0 0
      %452 = vmatprep.subr.bf16.mxu0 0
      %453 = vmatpush1.bf16.msra.mxu0 0
      %454 = vmatprep.subr.bf16.mxu0 0
      %455 = vmatpush1.bf16.msra.mxu0 0
      %456 = vmatprep.subr.bf16.mxu0 0
      %457 = vmatpush1.bf16.msra.mxu0 0
      %458 = vmatprep.subr.bf16.mxu0 0
      %459 = vmatpush1.bf16.msra.mxu0 0
      %460 = vmatprep.mubr.bf16.mxu0 0
      %461 = vmatmul.mubr.bf16.gmra.mrb[0].mxu0 %v426
      %v462 = vpop.f32.mrb[0].mxu0
      %v463 = vadd.f32 %v410, %v462
      %v464 = vpop.f32.mrb[0].mxu0
      %v465 = vpop.f32.mrb[0].mxu0
      %v466 = vpop.f32.mrb[0].mxu0
      %467 = vdwg.mxu0
      %v468 = vld [vmem:[%s375] sm:$0xf]
      %v469 = vld [vmem:[%s375 + $0x4] sm:$0xf]
      %v470 = vld [vmem:[%s375 + $0x8] sm:$0xf]
      %v471 = vld [vmem:[%s375 + $0xc] sm:$0xf]
      %v472 = vld [vmem:[%s386] sm:$0x1]
      %v474 = vlaneseq
      %v475 = vshrl.u32 %v474, 7
      %v476 = vsub.s32 0, %v475
      %v477 = vrot.slane %v472, %v476
      %v483 = vunpack.c.l.b16 %v468
      %v484 = vunpack.c.l.b16 %v469
      %v485 = vunpack.c.l.b16 %v470
      %v486 = vunpack.c.l.b16 %v471
      %v487 = vpack.c.b16 %v484, %v483
      %v488 = vpack.c.b16 %v486, %v485
      %491 = vmatprep.subr.bf16.mxu0 0
      %492 = vmatpush1.bf16.msra.mxu0 %v487
      %493 = vmatprep.subr.bf16.mxu0 0
      %494 = vmatpush1.bf16.msra.mxu0 %v488
      %495 = vmatprep.subr.bf16.mxu0 0
      %496 = vmatpush1.bf16.msra.mxu0 0
      %497 = vmatprep.subr.bf16.mxu0 0
      %498 = vmatpush1.bf16.msra.mxu0 0
      %499 = vmatprep.subr.bf16.mxu0 0
      %500 = vmatpush1.bf16.msra.mxu0 0
      %501 = vmatprep.subr.bf16.mxu0 0
      %502 = vmatpush1.bf16.msra.mxu0 0
      %503 = vmatprep.subr.bf16.mxu0 0
      %504 = vmatpush1.bf16.msra.mxu0 0
      %505 = vmatprep.subr.bf16.mxu0 0
      %506 = vmatpush1.bf16.msra.mxu0 0
      %507 = vmatprep.subr.bf16.mxu0 0
      %508 = vmatpush1.bf16.msra.mxu0 0
      %509 = vmatprep.subr.bf16.mxu0 0
      %510 = vmatpush1.bf16.msra.mxu0 0
      %511 = vmatprep.subr.bf16.mxu0 0
      %512 = vmatpush1.bf16.msra.mxu0 0
      %513 = vmatprep.subr.bf16.mxu0 0
      %514 = vmatpush1.bf16.msra.mxu0 0
      %515 = vmatprep.subr.bf16.mxu0 0
      %516 = vmatpush1.bf16.msra.mxu0 0
      %517 = vmatprep.subr.bf16.mxu0 0
      %518 = vmatpush1.bf16.msra.mxu0 0
      %519 = vmatprep.subr.bf16.mxu0 0
      %520 = vmatpush1.bf16.msra.mxu0 0
      %521 = vmatprep.subr.bf16.mxu0 0
      %522 = vmatpush1.bf16.msra.mxu0 0
      %523 = vmatprep.mubr.bf16.mxu0 0
      %524 = vmatmul.mubr.bf16.gmra.mrb[0].mxu0 %v426
      %v525 = vpop.f32.mrb[0].mxu0
      %v526 = vadd.f32 %v477, %v525
      %v527 = vpop.f32.mrb[0].mxu0
      %v528 = vpop.f32.mrb[0].mxu0
      %v529 = vpop.f32.mrb[0].mxu0
      %530 = vdwg.mxu0
      %v531 = vld [vmem:[%s380] sm:$0xf]
      %v532 = vld [vmem:[%s380 + $0x4] sm:$0xf]
      %v533 = vld [vmem:[%s380 + $0x8] sm:$0xf]
      %v534 = vld [vmem:[%s380 + $0xc] sm:$0xf]
      %v535 = vld [vmem:[%s389] sm:$0x1]
      %v537 = vlaneseq
      %v538 = vshrl.u32 %v537, 7
      %v539 = vsub.s32 0, %v538
      %v540 = vrot.slane %v535, %v539
      %v546 = vunpack.c.l.b16 %v531
      %v547 = vunpack.c.l.b16 %v532
      %v548 = vunpack.c.l.b16 %v533
      %v549 = vunpack.c.l.b16 %v534
      %v550 = vpack.c.b16 %v547, %v546
      %v551 = vpack.c.b16 %v549, %v548
      %554 = vmatprep.subr.bf16.mxu0 0
      %555 = vmatpush1.bf16.msra.mxu0 %v550
      %556 = vmatprep.subr.bf16.mxu0 0
      %557 = vmatpush1.bf16.msra.mxu0 %v551
      %558 = vmatprep.subr.bf16.mxu0 0
      %559 = vmatpush1.bf16.msra.mxu0 0
      %560 = vmatprep.subr.bf16.mxu0 0
      %561 = vmatpush1.bf16.msra.mxu0 0
      %562 = vmatprep.subr.bf16.mxu0 0
      %563 = vmatpush1.bf16.msra.mxu0 0
      %564 = vmatprep.subr.bf16.mxu0 0
      %565 = vmatpush1.bf16.msra.mxu0 0
      %566 = vmatprep.subr.bf16.mxu0 0
      %567 = vmatpush1.bf16.msra.mxu0 0
      %568 = vmatprep.subr.bf16.mxu0 0
      %569 = vmatpush1.bf16.msra.mxu0 0
      %570 = vmatprep.subr.bf16.mxu0 0
      %571 = vmatpush1.bf16.msra.mxu0 0
      %572 = vmatprep.subr.bf16.mxu0 0
      %573 = vmatpush1.bf16.msra.mxu0 0
      %574 = vmatprep.subr.bf16.mxu0 0
      %575 = vmatpush1.bf16.msra.mxu0 0
      %576 = vmatprep.subr.bf16.mxu0 0
      %577 = vmatpush1.bf16.msra.mxu0 0
      %578 = vmatprep.subr.bf16.mxu0 0
      %579 = vmatpush1.bf16.msra.mxu0 0
      %580 = vmatprep.subr.bf16.mxu0 0
      %581 = vmatpush1.bf16.msra.mxu0 0
      %582 = vmatprep.subr.bf16.mxu0 0
      %583 = vmatpush1.bf16.msra.mxu0 0
      %584 = vmatprep.subr.bf16.mxu0 0
      %585 = vmatpush1.bf16.msra.mxu0 0
      %586 = vmatprep.mubr.bf16.mxu0 0
      %587 = vmatmul.mubr.bf16.gmra.mrb[0].mxu0 %v426
      %v588 = vpop.f32.mrb[0].mxu0
      %v589 = vadd.f32 %v540, %v588
      %v590 = vpop.f32.mrb[0].mxu0
      %v591 = vpop.f32.mrb[0].mxu0
      %v592 = vpop.f32.mrb[0].mxu0
      %593 = vdwg.mxu0
      %v594 = vpack.c.bf16 %v463, %v463
      %v595 = vpack.c.bf16 %v526, %v526
      %vm596 = vcmask 64512
      %v598 = vsel %vm596, %v594, 0
      %v601 = vsel %vm596, %v595, 0
      %603 = vmatprep.subr.bf16.mxu0 0
      %604 = vmatpush1.bf16.xpose.msra.mxu0 %v601
      %605 = vmatprep.subr.bf16.mxu0 0
      %606 = vmatpush1.bf16.xpose.msra.mxu0 0
      %607 = vmatprep.subr.bf16.mxu0 0
      %608 = vmatpush1.bf16.xpose.msra.mxu0 0
      %609 = vmatprep.subr.bf16.mxu0 0
      %610 = vmatpush1.bf16.xpose.msra.mxu0 0
      %611 = vmatprep.subr.bf16.mxu0 0
      %612 = vmatpush1.bf16.xpose.msra.mxu0 0
      %613 = vmatprep.subr.bf16.mxu0 0
      %614 = vmatpush1.bf16.xpose.msra.mxu0 0
      %615 = vmatprep.subr.bf16.mxu0 0
      %616 = vmatpush1.bf16.xpose.msra.mxu0 0
      %617 = vmatprep.subr.bf16.mxu0 0
      %618 = vmatpush1.bf16.xpose.msra.mxu0 0
      %619 = vmatprep.subr.bf16.mxu0 0
      %620 = vmatpush1.bf16.xpose.msra.mxu0 0
      %621 = vmatprep.subr.bf16.mxu0 0
      %622 = vmatpush1.bf16.xpose.msra.mxu0 0
      %623 = vmatprep.subr.bf16.mxu0 0
      %624 = vmatpush1.bf16.xpose.msra.mxu0 0
      %625 = vmatprep.subr.bf16.mxu0 0
      %626 = vmatpush1.bf16.xpose.msra.mxu0 0
      %627 = vmatprep.subr.bf16.mxu0 0
      %628 = vmatpush1.bf16.xpose.msra.mxu0 0
      %629 = vmatprep.subr.bf16.mxu0 0
      %630 = vmatpush1.bf16.xpose.msra.mxu0 0
      %631 = vmatprep.subr.bf16.mxu0 0
      %632 = vmatpush1.bf16.xpose.msra.mxu0 0
      %633 = vmatprep.subr.bf16.mxu0 0
      %634 = vmatpush1.bf16.xpose.msra.mxu0 0
      %635 = vmatprep.mubr.bf16.mxu0 0
      %636 = vmatmul.mubr.bf16.gmra.mrb[0].mxu0 %v598
      %v637 = vpop.f32.mrb[0].mxu0
      %v638 = vadd.f32 0.0, %v637
      %v639 = vpop.f32.mrb[0].mxu0
      %v640 = vpop.f32.mrb[0].mxu0
      %v641 = vpop.f32.mrb[0].mxu0
      %642 = vdwg.mxu0
      %v643 = vsel %vm596, %v638, -inf
      %644 = vmax.xlane.f32.xlu0 %v643
      %v645 = vpop.xlane.xlu0 %644
      %v646 = vsub.f32 %v638, %v645
      %v647 = vmul.f32 %v646, 1.442695
      %v648 = vpow.pop %v647
      %v649 = vsel %vm596, %v648, 0.0
      %650 = vadd.xlane.f32.xlu0 %v649
      %v651 = vpop.xlane.xlu0 %650
      %v652 = vpack.c.bf16 %v648, %v648
      %v653 = vpack.c.bf16 %v589, %v589
      %v655 = vsel %vm596, %v652, 0
      %vm657 = vcmask 1043456
      %v659 = vsel %vm657, %v653, 0
      %661 = vmatprep.subr.bf16.mxu0 0
      %662 = vmatpush1.bf16.msra.mxu0 %v659
      %663 = vmatprep.subr.bf16.mxu0 0
      %664 = vmatpush1.bf16.msra.mxu0 0
      %665 = vmatprep.subr.bf16.mxu0 0
      %666 = vmatpush1.bf16.msra.mxu0 0
      %667 = vmatprep.subr.bf16.mxu0 0
      %668 = vmatpush1.bf16.msra.mxu0 0
      %669 = vmatprep.subr.bf16.mxu0 0
      %670 = vmatpush1.bf16.msra.mxu0 0
      %671 = vmatprep.subr.bf16.mxu0 0
      %672 = vmatpush1.bf16.msra.mxu0 0
      %673 = vmatprep.subr.bf16.mxu0 0
      %674 = vmatpush1.bf16.msra.mxu0 0
      %675 = vmatprep.subr.bf16.mxu0 0
      %676 = vmatpush1.bf16.msra.mxu0 0
      %677 = vmatprep.subr.bf16.mxu0 0
      %678 = vmatpush1.bf16.msra.mxu0 0
      %679 = vmatprep.subr.bf16.mxu0 0
      %680 = vmatpush1.bf16.msra.mxu0 0
      %681 = vmatprep.subr.bf16.mxu0 0
      %682 = vmatpush1.bf16.msra.mxu0 0
      %683 = vmatprep.subr.bf16.mxu0 0
      %684 = vmatpush1.bf16.msra.mxu0 0
      %685 = vmatprep.subr.bf16.mxu0 0
      %686 = vmatpush1.bf16.msra.mxu0 0
      %687 = vmatprep.subr.bf16.mxu0 0
      %688 = vmatpush1.bf16.msra.mxu0 0
      %689 = vmatprep.subr.bf16.mxu0 0
      %690 = vmatpush1.bf16.msra.mxu0 0
      %691 = vmatprep.subr.bf16.mxu0 0
      %692 = vmatpush1.bf16.msra.mxu0 0
      %693 = vmatprep.mubr.bf16.mxu0 0
      %694 = vmatmul.mubr.bf16.gmra.mrb[0].mxu0 %v655
      %v695 = vpop.f32.mrb[0].mxu0
      %v696 = vadd.f32 0.0, %v695
      %v697 = vpop.f32.mrb[0].mxu0
      %v698 = vpop.f32.mrb[0].mxu0
      %v699 = vpop.f32.mrb[0].mxu0
      %700 = vdwg.mxu0
      %v701 = vrcp.pop %v651
      %v702 = vmul.f32 %v696, %v701
      %703 = vst.msk [vmem:[%s397] sm:$0xff] %vm596, %v702
      %p704 = scmp.lt.s32.totalorder %s22, 1
      %s705 = scalar_select %p704, %s22, 1
      %p706 = scmp.lt.s32.totalorder %s23, 3
      %s707 = scalar_select %p706, %s23, 3
      %s708 = smul.addr %s705, 4
      %s709 = sadd.s32 %s707, %s708
      %s710 = smul.addr %s709, 8
      %s711 = scalar_lea.vmem %s7, %s710
      // Predicated region
      $region49: #{cross_attention_forward.3} parent=47 // pred_check
        %p712 = pneg %p232
      $region50: #{cross_attention_forward.3} parent=47 // pred_check_branch
        %714 = sbr.rel (%p712) target = $region52
      $region51: #{cross_attention_forward.3} parent=47 // pred_region
        _
      $region52: #{cross_attention_forward.3} parent=47 // pred_fallthru
        _
    $region48: #{cross_attention_forward.3} parent=5 // pred_fallthru
      _
    %p715 = scmp.le.s32.totalorder 2, %s13
    // Predicated region
    $region53: #{cross_attention_forward.3} parent=5 // pred_check
      %p716 = pneg %p715
    $region54: #{cross_attention_forward.3} parent=5 // pred_check_branch
      %718 = sbr.rel (%p716) target = $region56
    $region55: #{cross_attention_forward.3} parent=5 // pred_region
      %s719 = ssub.s32 %s13, 2
      // Predicated region
      $region57: #{cross_attention_forward.3} parent=55 // pred_check
        %p720 = pneg %p238
      $region58: #{cross_attention_forward.3} parent=55 // pred_check_branch
        %722 = sbr.rel (%p720) target = $region60
      $region59: #{cross_attention_forward.3} parent=55 // pred_region
        %p723 = scmp.lt.s32.totalorder %s24, 1
        %s724 = scalar_select %p723, %s24, 1
        %p725 = scmp.lt.s32.totalorder %s25, 3
        %s726 = scalar_select %p725, %s25, 3
        %s727 = smul.addr %s724, 4
        %s728 = sadd.s32 %s726, %s727
        %s729 = smul.addr %s728, 8
        %s730 = scalar_lea.vmem %s7, %s729
      $region60: #{cross_attention_forward.3} parent=55 // pred_fallthru
        _
    $region56: #{cross_attention_forward.3} parent=5 // pred_fallthru
      _
  $region6: #{cross_attention_forward.3} parent=0 // loop_footer
    %s17 = sadd.s32 1, %s13
  $region7: #{cross_attention_forward.3} parent=0 // loop_footer_branch
    %12 = sbr.rel target = $region3
  $region8: #{cross_attention_forward.3} parent=0 // loop_exit
    _

// kernel: cross_attention_forward.4
$region0: #{cross_attention_forward.4}
  #allocation0 [shape = 'u32[]', space=smem, size = 0x4, offset = 0x4, fixed_abs, tag = 'smem constant byte address 0x4 - core index']
  #allocation1 [shape = 'u32[144,128]{1,0:T(1,128)}', space=vmem, size = 0x12000, scoped, tag = 'internal scratch']
  %s0 = inlined_call_operand.vmem [shape: f32[2,8,32], index: 0, kind: input, shape index: {}]
  %s1 = inlined_call_operand.vmem [shape: f32[2,8,32], index: 1, kind: input, shape index: {}]
  %s2 = inlined_call_operand.vmem [shape: bf16[4,32,8], index: 2, kind: input, shape index: {}]
  %s3 = inlined_call_operand.vmem [shape: bf16[4,32,8], index: 3, kind: input, shape index: {}]
  %s4 = inlined_call_operand.vmem [shape: bf16[4,32,8], index: 4, kind: input, shape index: {}]
  %s5 = inlined_call_operand.vmem [shape: f32[4,1,8], index: 5, kind: input, shape index: {}]
  %s6 = inlined_call_operand.vmem [shape: f32[4,1,8], index: 6, kind: input, shape index: {}]
  %s7 = inlined_call_operand.vmem [shape: f32[4,1,8], index: 7, kind: input, shape index: {}]
  %s8 = inlined_call_operand.vmem [shape: bf16[2,4,8,8], index: 8, kind: output, shape index: {0}]
  %s9 = inlined_call_operand.hbm [shape: f32[2,4,8,8], index: 9, kind: output, shape index: {1}]
  %10 = xla_tuple %s8, %s9
  %s11 = sld [smem:[#allocation0]]
  $region73: #{cross_attention_forward.4} parent=0
    _
  %s13 = ssub.s32 1, %s11
  %s14 = scalar_select 0, %s13, %s11
  $region1: #{cross_attention_forward.4} parent=0
    #allocation2 [shape = 'u8[8192]{0}', space=vmem, size = 0x2000, scoped, tag = 'output window, operand 1']
    #allocation3 [shape = 's32[2]{0}', space=sflag, size = 0x8, scoped, tag = 'scoped memory for cross_attention_forward.4']
    %15 = vsyncpa [#allocation3], 0
    %s16 = scalar_lea.sflag [#allocation3], 1
    %17 = vsyncpa %s16, 0
    loop: start=0, step=1, limit=10
    $region2: #{cross_attention_forward.4} parent=1 // loop_pre_header
      _
    $region3: #{cross_attention_forward.4} parent=1 // loop_header
      %s19 = sphi 0, %s23
      %p20 = scmp.ge.s32.totalorder %s19, 10
      %s26 = sphi 0, %s38
      %s27 = sphi 0, %s34
      %s28 = sphi 0, %s26
      %s29 = sphi 0, %s27
      %s30 = sphi 0, %s28
      %s31 = sphi 0, %s29
      %s41 = sphi 0, %s43
      %s44 = sphi 0, %s41
      %s45 = sphi 0, %s44
      %s61 = sphi 0, %s45
      %s67 = sphi 0, %s69
      %s70 = sphi 0, %s67
      %s71 = sphi 0, %s70
      %s87 = sphi 0, %s71
      %s93 = sphi 0, %s95
      %s96 = sphi 0, %s93
      %s97 = sphi 0, %s96
      %s113 = sphi 0, %s97
      %s119 = sphi 0, %s121
      %s122 = sphi 0, %s119
      %s123 = sphi 0, %s122
      %s139 = sphi 0, %s123
      %s145 = sphi 0, %s147
      %s148 = sphi 0, %s145
      %s149 = sphi 0, %s148
      %s165 = sphi 0, %s149
      %s171 = sphi 0, %s173
      %s174 = sphi 0, %s171
      %s175 = sphi 0, %s174
      %s191 = sphi 0, %s175
      %s197 = sphi 0, %s199
      %s200 = sphi 0, %s197
      %s201 = sphi 0, %s200
      %s217 = sphi 0, %s201
      %s223 = sphi 0, %s225
      %s226 = sphi 0, %s223
      %s227 = sphi 0, %s226
      %s243 = sphi 0, %s227
      %s251 = sphi 0, %s253
      %s254 = sphi 0, %s251
      %s255 = sphi 0, %s254
      %s271 = sphi 0, %s255
      %s279 = sphi 0, %s281
      %s282 = sphi 0, %s279
      %s283 = sphi 0, %s282
      %s299 = sphi 0, %s283
    $region4: #{cross_attention_forward.4} parent=1 // loop_header_branch
      %22 = sbr.rel (%p20) target = $region8
    $region5: #{cross_attention_forward.4} parent=1 // loop_body
      %s24 = ssub.s32 %s19, 1
      %s25 = ssub.s32 %s19, 2
      %s32 = sadd.s32 1, %s27
      %p33 = scmp.ge.s32.totalorder %s32, 4
      %s34 = scalar_select %p33, 0, %s32
      %s35 = sadd.s32 1, %s26
      %s36 = scalar_select %p33, %s35, %s26
      %p37 = scmp.ge.s32.totalorder %s36, 2
      %s38 = scalar_select %p37, 0, %s36
      %s39 = ssub.s32 %s26, %s38
      %p40 = scmp.eq.s32.totalorder %s39, 0
      %s42 = sadd.s32 %s41, 1
      %s43 = scalar_select %p40, %s41, %s42
      %p46 = pneg %p40
      %p47 = scmp.eq.s32.totalorder %s19, 7
      %p48 = por %p46, %p47
      %p49 = scmp.ne.s32.totalorder %s41, %s44
      %p50 = scmp.eq.s32.totalorder %s19, 0
      %p51 = por %p49, %p50
      %p52 = scmp.ne.s32.totalorder %s41, %s44
      %p53 = scmp.eq.s32.totalorder %s24, 7
      %p54 = por %p52, %p53
      %p55 = scmp.ne.s32.totalorder %s44, %s45
      %p56 = scmp.eq.s32.totalorder %s24, 0
      %p57 = por %p55, %p56
      %p58 = scmp.ne.s32.totalorder %s44, %s45
      %p59 = scmp.eq.s32.totalorder %s25, 7
      %p60 = por %p58, %p59
      %p62 = scmp.ne.s32.totalorder %s45, %s61
      %p63 = scmp.eq.s32.totalorder %s25, 0
      %p64 = por %p62, %p63
      %s65 = ssub.s32 %s26, %s38
      %p66 = scmp.eq.s32.totalorder %s65, 0
      %s68 = sadd.s32 %s67, 1
      %s69 = scalar_select %p66, %s67, %s68
      %p72 = pneg %p66
      %p73 = scmp.eq.s32.totalorder %s19, 7
      %p74 = por %p72, %p73
      %p75 = scmp.ne.s32.totalorder %s67, %s70
      %p76 = scmp.eq.s32.totalorder %s19, 0
      %p77 = por %p75, %p76
      %p78 = scmp.ne.s32.totalorder %s67, %s70
      %p79 = scmp.eq.s32.totalorder %s24, 7
      %p80 = por %p78, %p79
      %p81 = scmp.ne.s32.totalorder %s70, %s71
      %p82 = scmp.eq.s32.totalorder %s24, 0
      %p83 = por %p81, %p82
      %p84 = scmp.ne.s32.totalorder %s70, %s71
      %p85 = scmp.eq.s32.totalorder %s25, 7
      %p86 = por %p84, %p85
      %p88 = scmp.ne.s32.totalorder %s71, %s87
      %p89 = scmp.eq.s32.totalorder %s25, 0
      %p90 = por %p88, %p89
      %s91 = ssub.s32 %s27, %s34
      %p92 = scmp.eq.s32.totalorder %s91, 0
      %s94 = sadd.s32 %s93, 1
      %s95 = scalar_select %p92, %s93, %s94
      %p98 = pneg %p92
      %p99 = scmp.eq.s32.totalorder %s19, 7
      %p100 = por %p98, %p99
      %p101 = scmp.ne.s32.totalorder %s93, %s96
      %p102 = scmp.eq.s32.totalorder %s19, 0
      %p103 = por %p101, %p102
      %p104 = scmp.ne.s32.totalorder %s93, %s96
      %p105 = scmp.eq.s32.totalorder %s24, 7
      %p106 = por %p104, %p105
      %p107 = scmp.ne.s32.totalorder %s96, %s97
      %p108 = scmp.eq.s32.totalorder %s24, 0
      %p109 = por %p107, %p108
      %p110 = scmp.ne.s32.totalorder %s96, %s97
      %p111 = scmp.eq.s32.totalorder %s25, 7
      %p112 = por %p110, %p111
      %p114 = scmp.ne.s32.totalorder %s97, %s113
      %p115 = scmp.eq.s32.totalorder %s25, 0
      %p116 = por %p114, %p115
      %s117 = ssub.s32 %s27, %s34
      %p118 = scmp.eq.s32.totalorder %s117, 0
      %s120 = sadd.s32 %s119, 1
      %s121 = scalar_select %p118, %s119, %s120
      %p124 = pneg %p118
      %p125 = scmp.eq.s32.totalorder %s19, 7
      %p126 = por %p124, %p125
      %p127 = scmp.ne.s32.totalorder %s119, %s122
      %p128 = scmp.eq.s32.totalorder %s19, 0
      %p129 = por %p127, %p128
      %p130 = scmp.ne.s32.totalorder %s119, %s122
      %p131 = scmp.eq.s32.totalorder %s24, 7
      %p132 = por %p130, %p131
      %p133 = scmp.ne.s32.totalorder %s122, %s123
      %p134 = scmp.eq.s32.totalorder %s24, 0
      %p135 = por %p133, %p134
      %p136 = scmp.ne.s32.totalorder %s122, %s123
      %p137 = scmp.eq.s32.totalorder %s25, 7
      %p138 = por %p136, %p137
      %p140 = scmp.ne.s32.totalorder %s123, %s139
      %p141 = scmp.eq.s32.totalorder %s25, 0
      %p142 = por %p140, %p141
      %s143 = ssub.s32 %s27, %s34
      %p144 = scmp.eq.s32.totalorder %s143, 0
      %s146 = sadd.s32 %s145, 1
      %s147 = scalar_select %p144, %s145, %s146
      %p150 = pneg %p144
      %p151 = scmp.eq.s32.totalorder %s19, 7
      %p152 = por %p150, %p151
      %p153 = scmp.ne.s32.totalorder %s145, %s148
      %p154 = scmp.eq.s32.totalorder %s19, 0
      %p155 = por %p153, %p154
      %p156 = scmp.ne.s32.totalorder %s145, %s148
      %p157 = scmp.eq.s32.totalorder %s24, 7
      %p158 = por %p156, %p157
      %p159 = scmp.ne.s32.totalorder %s148, %s149
      %p160 = scmp.eq.s32.totalorder %s24, 0
      %p161 = por %p159, %p160
      %p162 = scmp.ne.s32.totalorder %s148, %s149
      %p163 = scmp.eq.s32.totalorder %s25, 7
      %p164 = por %p162, %p163
      %p166 = scmp.ne.s32.totalorder %s149, %s165
      %p167 = scmp.eq.s32.totalorder %s25, 0
      %p168 = por %p166, %p167
      %s169 = ssub.s32 %s27, %s34
      %p170 = scmp.eq.s32.totalorder %s169, 0
      %s172 = sadd.s32 %s171, 1
      %s173 = scalar_select %p170, %s171, %s172
      %p176 = pneg %p170
      %p177 = scmp.eq.s32.totalorder %s19, 7
      %p178 = por %p176, %p177
      %p179 = scmp.ne.s32.totalorder %s171, %s174
      %p180 = scmp.eq.s32.totalorder %s19, 0
      %p181 = por %p179, %p180
      %p182 = scmp.ne.s32.totalorder %s171, %s174
      %p183 = scmp.eq.s32.totalorder %s24, 7
      %p184 = por %p182, %p183
      %p185 = scmp.ne.s32.totalorder %s174, %s175
      %p186 = scmp.eq.s32.totalorder %s24, 0
      %p187 = por %p185, %p186
      %p188 = scmp.ne.s32.totalorder %s174, %s175
      %p189 = scmp.eq.s32.totalorder %s25, 7
      %p190 = por %p188, %p189
      %p192 = scmp.ne.s32.totalorder %s175, %s191
      %p193 = scmp.eq.s32.totalorder %s25, 0
      %p194 = por %p192, %p193
      %s195 = ssub.s32 %s27, %s34
      %p196 = scmp.eq.s32.totalorder %s195, 0
      %s198 = sadd.s32 %s197, 1
      %s199 = scalar_select %p196, %s197, %s198
      %p202 = pneg %p196
      %p203 = scmp.eq.s32.totalorder %s19, 7
      %p204 = por %p202, %p203
      %p205 = scmp.ne.s32.totalorder %s197, %s200
      %p206 = scmp.eq.s32.totalorder %s19, 0
      %p207 = por %p205, %p206
      %p208 = scmp.ne.s32.totalorder %s197, %s200
      %p209 = scmp.eq.s32.totalorder %s24, 7
      %p210 = por %p208, %p209
      %p211 = scmp.ne.s32.totalorder %s200, %s201
      %p212 = scmp.eq.s32.totalorder %s24, 0
      %p213 = por %p211, %p212
      %p214 = scmp.ne.s32.totalorder %s200, %s201
      %p215 = scmp.eq.s32.totalorder %s25, 7
      %p216 = por %p214, %p215
      %p218 = scmp.ne.s32.totalorder %s201, %s217
      %p219 = scmp.eq.s32.totalorder %s25, 0
      %p220 = por %p218, %p219
      %s221 = ssub.s32 %s27, %s34
      %p222 = scmp.eq.s32.totalorder %s221, 0
      %s224 = sadd.s32 %s223, 1
      %s225 = scalar_select %p222, %s223, %s224
      %p228 = pneg %p222
      %p229 = scmp.eq.s32.totalorder %s19, 7
      %p230 = por %p228, %p229
      %p231 = scmp.ne.s32.totalorder %s223, %s226
      %p232 = scmp.eq.s32.totalorder %s19, 0
      %p233 = por %p231, %p232
      %p234 = scmp.ne.s32.totalorder %s223, %s226
      %p235 = scmp.eq.s32.totalorder %s24, 7
      %p236 = por %p234, %p235
      %p237 = scmp.ne.s32.totalorder %s226, %s227
      %p238 = scmp.eq.s32.totalorder %s24, 0
      %p239 = por %p237, %p238
      %p240 = scmp.ne.s32.totalorder %s226, %s227
      %p241 = scmp.eq.s32.totalorder %s25, 7
      %p242 = por %p240, %p241
      %p244 = scmp.ne.s32.totalorder %s227, %s243
      %p245 = scmp.eq.s32.totalorder %s25, 0
      %p246 = por %p244, %p245
      %s247 = ssub.s32 %s26, %s38
      %s248 = ssub.s32 %s27, %s34
      %s249 = sor.u32 %s247, %s248
      %p250 = scmp.eq.s32.totalorder %s249, 0
      %s252 = sadd.s32 %s251, 1
      %s253 = scalar_select %p250, %s251, %s252
      %p256 = pneg %p250
      %p257 = scmp.eq.s32.totalorder %s19, 7
      %p258 = por %p256, %p257
      %p259 = scmp.ne.s32.totalorder %s251, %s254
      %p260 = scmp.eq.s32.totalorder %s19, 0
      %p261 = por %p259, %p260
      %p262 = scmp.ne.s32.totalorder %s251, %s254
      %p263 = scmp.eq.s32.totalorder %s24, 7
      %p264 = por %p262, %p263
      %p265 = scmp.ne.s32.totalorder %s254, %s255
      %p266 = scmp.eq.s32.totalorder %s24, 0
      %p267 = por %p265, %p266
      %p268 = scmp.ne.s32.totalorder %s254, %s255
      %p269 = scmp.eq.s32.totalorder %s25, 7
      %p270 = por %p268, %p269
      %p272 = scmp.ne.s32.totalorder %s255, %s271
      %p273 = scmp.eq.s32.totalorder %s25, 0
      %p274 = por %p272, %p273
      %s275 = ssub.s32 %s26, %s38
      %s276 = ssub.s32 %s27, %s34
      %s277 = sor.u32 %s275, %s276
      %p278 = scmp.eq.s32.totalorder %s277, 0
      %s280 = sadd.s32 %s279, 1
      %s281 = scalar_select %p278, %s279, %s280
      %p284 = pneg %p278
      %p285 = scmp.eq.s32.totalorder %s19, 7
      %p286 = por %p284, %p285
      %p287 = scmp.ne.s32.totalorder %s279, %s282
      %p288 = scmp.eq.s32.totalorder %s19, 0
      %p289 = por %p287, %p288
      %p290 = scmp.ne.s32.totalorder %s279, %s282
      %p291 = scmp.eq.s32.totalorder %s24, 7
      %p292 = por %p290, %p291
      %p293 = scmp.ne.s32.totalorder %s282, %s283
      %p294 = scmp.eq.s32.totalorder %s24, 0
      %p295 = por %p293, %p294
      %p296 = scmp.ne.s32.totalorder %s282, %s283
      %p297 = scmp.eq.s32.totalorder %s25, 7
      %p298 = por %p296, %p297
      %p300 = scmp.ne.s32.totalorder %s283, %s299
      %p301 = scmp.eq.s32.totalorder %s25, 0
      %p302 = por %p300, %p301
      %p303 = scmp.le.s32.totalorder 1, %s19
      %p304 = scmp.lt.s32.totalorder %s19, 9
      %p305 = pnand %p303, %p304
      %p306 = pneg %p305
      // Predicated region
      $region9: #{cross_attention_forward.4} parent=5 // pred_check
        _
      $region10: #{cross_attention_forward.4} parent=5 // pred_check_branch
        %308 = sbr.rel (%p305) target = $region12
      $region11: #{cross_attention_forward.4} parent=5 // pred_region
        %s309 = ssub.s32 %s19, 1
      $region12: #{cross_attention_forward.4} parent=5 // pred_fallthru
        _
      %p310 = scmp.lt.s32.totalorder %s19, 8
      // Predicated region
      $region13: #{cross_attention_forward.4} parent=5 // pred_check
        %p311 = pneg %p310
      $region14: #{cross_attention_forward.4} parent=5 // pred_check_branch
        %313 = sbr.rel (%p311) target = $region16
      $region15: #{cross_attention_forward.4} parent=5 // pred_region
        // Predicated region
        $region17: #{cross_attention_forward.4} parent=15 // pred_check
          %p314 = pneg %p51
        $region18: #{cross_attention_forward.4} parent=15 // pred_check_branch
          %316 = sbr.rel (%p314) target = $region20
        $region19: #{cross_attention_forward.4} parent=15 // pred_region
          %p317 = scmp.lt.s32.totalorder %s26, 1
          %s318 = scalar_select %p317, %s26, 1
          %s319 = smul.addr %s318, 8
          %s320 = scalar_lea.vmem %s0, %s319
        $region20: #{cross_attention_forward.4} parent=15 // pred_fallthru
          _
        // Predicated region
        $region21: #{cross_attention_forward.4} parent=15 // pred_check
          %p321 = pneg %p77
        $region22: #{cross_attention_forward.4} parent=15 // pred_check_branch
          %323 = sbr.rel (%p321) target = $region24
        $region23: #{cross_attention_forward.4} parent=15 // pred_region
          %p324 = scmp.lt.s32.totalorder %s26, 1
          %s325 = scalar_select %p324, %s26, 1
          %s326 = smul.addr %s325, 8
          %s327 = scalar_lea.vmem %s1, %s326
        $region24: #{cross_attention_forward.4} parent=15 // pred_fallthru
          _
        // Predicated region
        $region25: #{cross_attention_forward.4} parent=15 // pred_check
          %p328 = pneg %p103
        $region26: #{cross_attention_forward.4} parent=15 // pred_check_branch
          %330 = sbr.rel (%p328) target = $region28
        $region27: #{cross_attention_forward.4} parent=15 // pred_region
          %p331 = scmp.lt.s32.totalorder %s27, 3
          %s332 = scalar_select %p331, %s27, 3
          %s333 = smul.addr %s332, 4
          %s334 = smul.addr %s333, 4
          %s335 = scalar_lea.vmem %s2, %s334
        $region28: #{cross_attention_forward.4} parent=15 // pred_fallthru
          _
        // Predicated region
        $region29: #{cross_attention_forward.4} parent=15 // pred_check
          %p336 = pneg %p129
        $region30: #{cross_attention_forward.4} parent=15 // pred_check_branch
          %338 = sbr.rel (%p336) target = $region32
        $region31: #{cross_attention_forward.4} parent=15 // pred_region
          %p339 = scmp.lt.s32.totalorder %s27, 3
          %s340 = scalar_select %p339, %s27, 3
          %s341 = smul.addr %s340, 4
          %s342 = smul.addr %s341, 4
          %s343 = scalar_lea.vmem %s3, %s342
        $region32: #{cross_attention_forward.4} parent=15 // pred_fallthru
          _
        // Predicated region
        $region33: #{cross_attention_forward.4} parent=15 // pred_check
          %p344 = pneg %p155
        $region34: #{cross_attention_forward.4} parent=15 // pred_check_branch
          %346 = sbr.rel (%p344) target = $region36
        $region35: #{cross_attention_forward.4} parent=15 // pred_region
          %p347 = scmp.lt.s32.totalorder %s27, 3
          %s348 = scalar_select %p347, %s27, 3
          %s349 = smul.addr %s348, 4
          %s350 = smul.addr %s349, 4
          %s351 = scalar_lea.vmem %s4, %s350
        $region36: #{cross_attention_forward.4} parent=15 // pred_fallthru
          _
        // Predicated region
        $region37: #{cross_attention_forward.4} parent=15 // pred_check
          %p352 = pneg %p181
        $region38: #{cross_attention_forward.4} parent=15 // pred_check_branch
          %354 = sbr.rel (%p352) target = $region40
        $region39: #{cross_attention_forward.4} parent=15 // pred_region
          %p355 = scmp.lt.s32.totalorder %s27, 3
          %s356 = scalar_select %p355, %s27, 3
          %s357 = scalar_lea.vmem %s5, %s356
        $region40: #{cross_attention_forward.4} parent=15 // pred_fallthru
          _
        // Predicated region
        $region41: #{cross_attention_forward.4} parent=15 // pred_check
          %p358 = pneg %p207
        $region42: #{cross_attention_forward.4} parent=15 // pred_check_branch
          %360 = sbr.rel (%p358) target = $region44
        $region43: #{cross_attention_forward.4} parent=15 // pred_region
          %p361 = scmp.lt.s32.totalorder %s27, 3
          %s362 = scalar_select %p361, %s27, 3
          %s363 = scalar_lea.vmem %s6, %s362
        $region44: #{cross_attention_forward.4} parent=15 // pred_fallthru
          _
        // Predicated region
        $region45: #{cross_attention_forward.4} parent=15 // pred_check
          %p364 = pneg %p233
        $region46: #{cross_attention_forward.4} parent=15 // pred_check_branch
          %366 = sbr.rel (%p364) target = $region48
        $region47: #{cross_attention_forward.4} parent=15 // pred_region
          %p367 = scmp.lt.s32.totalorder %s27, 3
          %s368 = scalar_select %p367, %s27, 3
          %s369 = scalar_lea.vmem %s7, %s368
        $region48: #{cross_attention_forward.4} parent=15 // pred_fallthru
          _
      $region16: #{cross_attention_forward.4} parent=5 // pred_fallthru
        _
      %p370 = scmp.le.s32.totalorder 1, %s19
      %p371 = scmp.lt.s32.totalorder %s19, 9
      %p372 = pnand %p370, %p371
      %p373 = pneg %p372
      // Predicated region
      $region49: #{cross_attention_forward.4} parent=5 // pred_check
        _
      $region50: #{cross_attention_forward.4} parent=5 // pred_check_branch
        %375 = sbr.rel (%p372) target = $region52
      $region51: #{cross_attention_forward.4} parent=5 // pred_region
        %s376 = ssub.s32 %s19, 1
        %p377 = scmp.lt.s32.totalorder %s28, 1
        %s378 = scalar_select %p377, %s28, 1
        %s379 = smul.addr %s378, 8
        %s380 = scalar_lea.vmem %s0, %s379
        %p381 = pneg %p57
        %p382 = pneg %p54
        %p383 = scmp.lt.s32.totalorder %s28, 1
        %s384 = scalar_select %p383, %s28, 1
        %s385 = smul.addr %s384, 8
        %s386 = scalar_lea.vmem %s1, %s385
        %p387 = pneg %p83
        %p388 = pneg %p80
        %p389 = scmp.lt.s32.totalorder %s29, 3
        %s390 = scalar_select %p389, %s29, 3
        %s391 = smul.addr %s390, 4
        %s392 = smul.addr %s391, 4
        %s393 = scalar_lea.vmem %s2, %s392
        %p394 = pneg %p109
        %p395 = pneg %p106
        %p396 = scmp.lt.s32.totalorder %s29, 3
        %s397 = scalar_select %p396, %s29, 3
        %s398 = smul.addr %s397, 4
        %s399 = smul.addr %s398, 4
        %s400 = scalar_lea.vmem %s3, %s399
        %p401 = pneg %p135
        %p402 = pneg %p132
        %p403 = scmp.lt.s32.totalorder %s29, 3
        %s404 = scalar_select %p403, %s29, 3
        %s405 = smul.addr %s404, 4
        %s406 = smul.addr %s405, 4
        %s407 = scalar_lea.vmem %s4, %s406
        %p408 = pneg %p161
        %p409 = pneg %p158
        %p410 = scmp.lt.s32.totalorder %s29, 3
        %s411 = scalar_select %p410, %s29, 3
        %s412 = scalar_lea.vmem %s5, %s411
        %p413 = pneg %p187
        %p414 = pneg %p184
        %p415 = scmp.lt.s32.totalorder %s29, 3
        %s416 = scalar_select %p415, %s29, 3
        %s417 = scalar_lea.vmem %s6, %s416
        %p418 = pneg %p213
        %p419 = pneg %p210
        %p420 = scmp.lt.s32.totalorder %s29, 3
        %s421 = scalar_select %p420, %s29, 3
        %s422 = scalar_lea.vmem %s7, %s421
        %p423 = pneg %p239
        %p424 = pneg %p236
        %p425 = pneg %p267
        %p426 = pneg %p264
        %p427 = scmp.lt.s32.totalorder %s28, 1
        %s428 = scalar_select %p427, %s28, 1
        %p429 = scmp.lt.s32.totalorder %s29, 3
        %s430 = scalar_select %p429, %s29, 3
        %s431 = smul.addr %s428, 4
        %s432 = sadd.s32 %s430, %s431
        %s433 = smul.addr %s432, 4
        %s434 = scalar_lea.vmem %s8, %s433
        %p435 = pneg %p295
        %p436 = pneg %p292
        %s437 = sand.u32 %s282, 1
        %s438 = scalar_lea.sflag [#allocation3], %s437
        %s439 = sand.u32 %s282, 1
        %s440 = smul.addr %s439, 8
        %s441 = scalar_lea.vmem [#allocation2], %s440
        %p442 = scmp.lt.s32.totalorder %s28, 1
        %s443 = scalar_select %p442, %s28, 1
        %s444 = smul.addr %s443, 8
        %s445 = scalar_lea.vmem %s0, %s444
        %p446 = scmp.lt.s32.totalorder %s28, 1
        %s447 = scalar_select %p446, %s28, 1
        %s448 = smul.addr %s447, 8
        %s449 = scalar_lea.vmem %s1, %s448
        %p450 = scmp.lt.s32.totalorder %s29, 3
        %s451 = scalar_select %p450, %s29, 3
        %s452 = smul.addr %s451, 4
        %s453 = smul.addr %s452, 4
        %s454 = scalar_lea.vmem %s2, %s453
        %p455 = scmp.lt.s32.totalorder %s29, 3
        %s456 = scalar_select %p455, %s29, 3
        %s457 = smul.addr %s456, 4
        %s458 = smul.addr %s457, 4
        %s459 = scalar_lea.vmem %s3, %s458
        %p460 = scmp.lt.s32.totalorder %s29, 3
        %s461 = scalar_select %p460, %s29, 3
        %s462 = smul.addr %s461, 4
        %s463 = smul.addr %s462, 4
        %s464 = scalar_lea.vmem %s4, %s463
        %p465 = scmp.lt.s32.totalorder %s29, 3
        %s466 = scalar_select %p465, %s29, 3
        %s467 = scalar_lea.vmem %s5, %s466
        %p468 = scmp.lt.s32.totalorder %s29, 3
        %s469 = scalar_select %p468, %s29, 3
        %s470 = scalar_lea.vmem %s6, %s469
        %p471 = scmp.lt.s32.totalorder %s29, 3
        %s472 = scalar_select %p471, %s29, 3
        %s473 = scalar_lea.vmem %s7, %s472
        %p474 = scmp.lt.s32.totalorder %s28, 1
        %s475 = scalar_select %p474, %s28, 1
        %p476 = scmp.lt.s32.totalorder %s29, 3
        %s477 = scalar_select %p476, %s29, 3
        %s478 = smul.addr %s475, 4
        %s479 = sadd.s32 %s477, %s478
        %s480 = smul.addr %s479, 4
        %s481 = scalar_lea.vmem %s8, %s480
        %v483 = vld [vmem:[%s445] sm:$0xff]
        %v484 = vpack.c.bf16 %v483, %v483
        %v485 = vld [vmem:[%s449] sm:$0xff]
        %v486 = vpack.c.bf16 %v485, %v485
        %v487 = vld [vmem:[%s454] sm:$0xf]
        %v488 = vld [vmem:[%s454 + $0x4] sm:$0xf]
        %v489 = vld [vmem:[%s454 + $0x8] sm:$0xf]
        %v490 = vld [vmem:[%s454 + $0xc] sm:$0xf]
        %v491 = vld [vmem:[%s467] sm:$0x1]
        %v493 = vlaneseq
        %v494 = vshrl.u32 %v493, 7
        %v495 = vsub.s32 0, %v494
        %v496 = vrot.slane %v491, %v495
        %v502 = vunpack.c.l.b16 %v487
        %v503 = vunpack.c.l.b16 %v488
        %v504 = vunpack.c.l.b16 %v489
        %v505 = vunpack.c.l.b16 %v490
        %v506 = vpack.c.b16 %v503, %v502
        %v507 = vpack.c.b16 %v505, %v504
        %vm510 = vcmask 261120
        %v512 = vsel %vm510, %v484, 0
        %514 = vmatprep.subr.bf16.mxu0 0
        %515 = vmatpush1.bf16.msra.mxu0 %v506
        %516 = vmatprep.subr.bf16.mxu0 0
        %517 = vmatpush1.bf16.msra.mxu0 %v507
        %518 = vmatprep.subr.bf16.mxu0 0
        %519 = vmatpush1.bf16.msra.mxu0 0
        %520 = vmatprep.subr.bf16.mxu0 0
        %521 = vmatpush1.bf16.msra.mxu0 0
        %522 = vmatprep.subr.bf16.mxu0 0
        %523 = vmatpush1.bf16.msra.mxu0 0
        %524 = vmatprep.subr.bf16.mxu0 0
        %525 = vmatpush1.bf16.msra.mxu0 0
        %526 = vmatprep.subr.bf16.mxu0 0
        %527 = vmatpush1.bf16.msra.mxu0 0
        %528 = vmatprep.subr.bf16.mxu0 0
        %529 = vmatpush1.bf16.msra.mxu0 0
        %530 = vmatprep.subr.bf16.mxu0 0
        %531 = vmatpush1.bf16.msra.mxu0 0
        %532 = vmatprep.subr.bf16.mxu0 0
        %533 = vmatpush1.bf16.msra.mxu0 0
        %534 = vmatprep.subr.bf16.mxu0 0
        %535 = vmatpush1.bf16.msra.mxu0 0
        %536 = vmatprep.subr.bf16.mxu0 0
        %537 = vmatpush1.bf16.msra.mxu0 0
        %538 = vmatprep.subr.bf16.mxu0 0
        %539 = vmatpush1.bf16.msra.mxu0 0
        %540 = vmatprep.subr.bf16.mxu0 0
        %541 = vmatpush1.bf16.msra.mxu0 0
        %542 = vmatprep.subr.bf16.mxu0 0
        %543 = vmatpush1.bf16.msra.mxu0 0
        %544 = vmatprep.subr.bf16.mxu0 0
        %545 = vmatpush1.bf16.msra.mxu0 0
        %546 = vmatprep.mubr.bf16.mxu0 0
        %547 = vmatmul.mubr.bf16.gmra.mrb[0].mxu0 %v512
        %v548 = vpop.f32.mrb[0].mxu0
        %v549 = vadd.f32 %v496, %v548
        %v550 = vpop.f32.mrb[0].mxu0
        %v551 = vpop.f32.mrb[0].mxu0
        %v552 = vpop.f32.mrb[0].mxu0
        %553 = vdwg.mxu0
        %v554 = vld [vmem:[%s459] sm:$0xf]
        %v555 = vld [vmem:[%s459 + $0x4] sm:$0xf]
        %v556 = vld [vmem:[%s459 + $0x8] sm:$0xf]
        %v557 = vld [vmem:[%s459 + $0xc] sm:$0xf]
        %v558 = vld [vmem:[%s470] sm:$0x1]
        %v560 = vlaneseq
        %v561 = vshrl.u32 %v560, 7
        %v562 = vsub.s32 0, %v561
        %v563 = vrot.slane %v558, %v562
        %v569 = vunpack.c.l.b16 %v554
        %v570 = vunpack.c.l.b16 %v555
        %v571 = vunpack.c.l.b16 %v556
        %v572 = vunpack.c.l.b16 %v557
        %v573 = vpack.c.b16 %v570, %v569
        %v574 = vpack.c.b16 %v572, %v571
        %v578 = vsel %vm510, %v486, 0
        %580 = vmatprep.subr.bf16.mxu0 0
        %581 = vmatpush1.bf16.msra.mxu0 %v573
        %582 = vmatprep.subr.bf16.mxu0 0
        %583 = vmatpush1.bf16.msra.mxu0 %v574
        %584 = vmatprep.subr.bf16.mxu0 0
        %585 = vmatpush1.bf16.msra.mxu0 0
        %586 = vmatprep.subr.bf16.mxu0 0
        %587 = vmatpush1.bf16.msra.mxu0 0
        %588 = vmatprep.subr.bf16.mxu0 0
        %589 = vmatpush1.bf16.msra.mxu0 0
        %590 = vmatprep.subr.bf16.mxu0 0
        %591 = vmatpush1.bf16.msra.mxu0 0
        %592 = vmatprep.subr.bf16.mxu0 0
        %593 = vmatpush1.bf16.msra.mxu0 0
        %594 = vmatprep.subr.bf16.mxu0 0
        %595 = vmatpush1.bf16.msra.mxu0 0
        %596 = vmatprep.subr.bf16.mxu0 0
        %597 = vmatpush1.bf16.msra.mxu0 0
        %598 = vmatprep.subr.bf16.mxu0 0
        %599 = vmatpush1.bf16.msra.mxu0 0
        %600 = vmatprep.subr.bf16.mxu0 0
        %601 = vmatpush1.bf16.msra.mxu0 0
        %602 = vmatprep.subr.bf16.mxu0 0
        %603 = vmatpush1.bf16.msra.mxu0 0
        %604 = vmatprep.subr.bf16.mxu0 0
        %605 = vmatpush1.bf16.msra.mxu0 0
        %606 = vmatprep.subr.bf16.mxu0 0
        %607 = vmatpush1.bf16.msra.mxu0 0
        %608 = vmatprep.subr.bf16.mxu0 0
        %609 = vmatpush1.bf16.msra.mxu0 0
        %610 = vmatprep.subr.bf16.mxu0 0
        %611 = vmatpush1.bf16.msra.mxu0 0
        %612 = vmatprep.mubr.bf16.mxu0 0
        %613 = vmatmul.mubr.bf16.gmra.mrb[0].mxu0 %v578
        %v614 = vpop.f32.mrb[0].mxu0
        %v615 = vadd.f32 %v563, %v614
        %v616 = vpop.f32.mrb[0].mxu0
        %v617 = vpop.f32.mrb[0].mxu0
        %v618 = vpop.f32.mrb[0].mxu0
        %619 = vdwg.mxu0
        %v620 = vld [vmem:[%s464] sm:$0xf]
        %v621 = vld [vmem:[%s464 + $0x4] sm:$0xf]
        %v622 = vld [vmem:[%s464 + $0x8] sm:$0xf]
        %v623 = vld [vmem:[%s464 + $0xc] sm:$0xf]
        %v624 = vld [vmem:[%s473] sm:$0x1]
        %v626 = vlaneseq
        %v627 = vshrl.u32 %v626, 7
        %v628 = vsub.s32 0, %v627
        %v629 = vrot.slane %v624, %v628
        %v635 = vunpack.c.l.b16 %v620
        %v636 = vunpack.c.l.b16 %v621
        %v637 = vunpack.c.l.b16 %v622
        %v638 = vunpack.c.l.b16 %v623
        %v639 = vpack.c.b16 %v636, %v635
        %v640 = vpack.c.b16 %v638, %v637
        %643 = vmatprep.subr.bf16.mxu0 0
        %644 = vmatpush1.bf16.msra.mxu0 %v639
        %645 = vmatprep.subr.bf16.mxu0 0
        %646 = vmatpush1.bf16.msra.mxu0 %v640
        %647 = vmatprep.subr.bf16.mxu0 0
        %648 = vmatpush1.bf16.msra.mxu0 0
        %649 = vmatprep.subr.bf16.mxu0 0
        %650 = vmatpush1.bf16.msra.mxu0 0
        %651 = vmatprep.subr.bf16.mxu0 0
        %652 = vmatpush1.bf16.msra.mxu0 0
        %653 = vmatprep.subr.bf16.mxu0 0
        %654 = vmatpush1.bf16.msra.mxu0 0
        %655 = vmatprep.subr.bf16.mxu0 0
        %656 = vmatpush1.bf16.msra.mxu0 0
        %657 = vmatprep.subr.bf16.mxu0 0
        %658 = vmatpush1.bf16.msra.mxu0 0
        %659 = vmatprep.subr.bf16.mxu0 0
        %660 = vmatpush1.bf16.msra.mxu0 0
        %661 = vmatprep.subr.bf16.mxu0 0
        %662 = vmatpush1.bf16.msra.mxu0 0
        %663 = vmatprep.subr.bf16.mxu0 0
        %664 = vmatpush1.bf16.msra.mxu0 0
        %665 = vmatprep.subr.bf16.mxu0 0
        %666 = vmatpush1.bf16.msra.mxu0 0
        %667 = vmatprep.subr.bf16.mxu0 0
        %668 = vmatpush1.bf16.msra.mxu0 0
        %669 = vmatprep.subr.bf16.mxu0 0
        %670 = vmatpush1.bf16.msra.mxu0 0
        %671 = vmatprep.subr.bf16.mxu0 0
        %672 = vmatpush1.bf16.msra.mxu0 0
        %673 = vmatprep.subr.bf16.mxu0 0
        %674 = vmatpush1.bf16.msra.mxu0 0
        %675 = vmatprep.mubr.bf16.mxu0 0
        %676 = vmatmul.mubr.bf16.gmra.mrb[0].mxu0 %v578
        %v677 = vpop.f32.mrb[0].mxu0
        %v678 = vadd.f32 %v629, %v677
        %v679 = vpop.f32.mrb[0].mxu0
        %v680 = vpop.f32.mrb[0].mxu0
        %v681 = vpop.f32.mrb[0].mxu0
        %682 = vdwg.mxu0
        %v683 = vpack.c.bf16 %v549, %v549
        %v684 = vpack.c.bf16 %v615, %v615
        %vm685 = vcmask 64512
        %v687 = vsel %vm685, %v683, 0
        %v690 = vsel %vm685, %v684, 0
        %692 = vmatprep.subr.bf16.mxu0 0
        %693 = vmatpush1.bf16.xpose.msra.mxu0 %v690
        %694 = vmatprep.subr.bf16.mxu0 0
        %695 = vmatpush1.bf16.xpose.msra.mxu0 0
        %696 = vmatprep.subr.bf16.mxu0 0
        %697 = vmatpush1.bf16.xpose.msra.mxu0 0
        %698 = vmatprep.subr.bf16.mxu0 0
        %699 = vmatpush1.bf16.xpose.msra.mxu0 0
        %700 = vmatprep.subr.bf16.mxu0 0
        %701 = vmatpush1.bf16.xpose.msra.mxu0 0
        %702 = vmatprep.subr.bf16.mxu0 0
        %703 = vmatpush1.bf16.xpose.msra.mxu0 0
        %704 = vmatprep.subr.bf16.mxu0 0
        %705 = vmatpush1.bf16.xpose.msra.mxu0 0
        %706 = vmatprep.subr.bf16.mxu0 0
        %707 = vmatpush1.bf16.xpose.msra.mxu0 0
        %708 = vmatprep.subr.bf16.mxu0 0
        %709 = vmatpush1.bf16.xpose.msra.mxu0 0
        %710 = vmatprep.subr.bf16.mxu0 0
        %711 = vmatpush1.bf16.xpose.msra.mxu0 0
        %712 = vmatprep.subr.bf16.mxu0 0
        %713 = vmatpush1.bf16.xpose.msra.mxu0 0
        %714 = vmatprep.subr.bf16.mxu0 0
        %715 = vmatpush1.bf16.xpose.msra.mxu0 0
        %716 = vmatprep.subr.bf16.mxu0 0
        %717 = vmatpush1.bf16.xpose.msra.mxu0 0
        %718 = vmatprep.subr.bf16.mxu0 0
        %719 = vmatpush1.bf16.xpose.msra.mxu0 0
        %720 = vmatprep.subr.bf16.mxu0 0
        %721 = vmatpush1.bf16.xpose.msra.mxu0 0
        %722 = vmatprep.subr.bf16.mxu0 0
        %723 = vmatpush1.bf16.xpose.msra.mxu0 0
        %724 = vmatprep.mubr.bf16.mxu0 0
        %725 = vmatmul.mubr.bf16.gmra.mrb[0].mxu0 %v687
        %v726 = vpop.f32.mrb[0].mxu0
        %v727 = vadd.f32 0.0, %v726
        %v728 = vpop.f32.mrb[0].mxu0
        %v729 = vpop.f32.mrb[0].mxu0
        %v730 = vpop.f32.mrb[0].mxu0
        %731 = vdwg.mxu0
        %v732 = vsel %vm685, %v727, -inf
        %733 = vmax.xlane.f32.xlu0 %v732
        %v734 = vpop.xlane.xlu0 %733
        %v735 = vsub.f32 %v727, %v734
        %v736 = vmul.f32 %v735, 1.442695
        %v737 = vpow.pop %v736
        %v738 = vsel %vm685, %v737, 0.0
        %739 = vadd.xlane.f32.xlu0 %v738
        %v740 = vpop.xlane.xlu0 %739
        %v741 = vrcp.pop %v740
        %v742 = vmul.f32 %v737, %v741
        %743 = vst.msk [vmem:[%s441] sm:$0xff] %vm685, %v742
        %v744 = vpack.c.bf16 %v742, %v742
        %v745 = vpack.c.bf16 %v678, %v678
        %v747 = vsel %vm685, %v744, 0
        %vm749 = vcmask 1043456
        %v751 = vsel %vm749, %v745, 0
        %753 = vmatprep.subr.bf16.mxu0 0
        %754 = vmatpush1.bf16.msra.mxu0 %v751
        %755 = vmatprep.subr.bf16.mxu0 0
        %756 = vmatpush1.bf16.msra.mxu0 0
        %757 = vmatprep.subr.bf16.mxu0 0
        %758 = vmatpush1.bf16.msra.mxu0 0
        %759 = vmatprep.subr.bf16.mxu0 0
        %760 = vmatpush1.bf16.msra.mxu0 0
        %761 = vmatprep.subr.bf16.mxu0 0
        %762 = vmatpush1.bf16.msra.mxu0 0
        %763 = vmatprep.subr.bf16.mxu0 0
        %764 = vmatpush1.bf16.msra.mxu0 0
        %765 = vmatprep.subr.bf16.mxu0 0
        %766 = vmatpush1.bf16.msra.mxu0 0
        %767 = vmatprep.subr.bf16.mxu0 0
        %768 = vmatpush1.bf16.msra.mxu0 0
        %769 = vmatprep.subr.bf16.mxu0 0
        %770 = vmatpush1.bf16.msra.mxu0 0
        %771 = vmatprep.subr.bf16.mxu0 0
        %772 = vmatpush1.bf16.msra.mxu0 0
        %773 = vmatprep.subr.bf16.mxu0 0
        %774 = vmatpush1.bf16.msra.mxu0 0
        %775 = vmatprep.subr.bf16.mxu0 0
        %776 = vmatpush1.bf16.msra.mxu0 0
        %777 = vmatprep.subr.bf16.mxu0 0
        %778 = vmatpush1.bf16.msra.mxu0 0
        %779 = vmatprep.subr.bf16.mxu0 0
        %780 = vmatpush1.bf16.msra.mxu0 0
        %781 = vmatprep.subr.bf16.mxu0 0
        %782 = vmatpush1.bf16.msra.mxu0 0
        %783 = vmatprep.subr.bf16.mxu0 0
        %784 = vmatpush1.bf16.msra.mxu0 0
        %785 = vmatprep.mubr.bf16.mxu0 0
        %786 = vmatmul.mubr.bf16.gmra.mrb[0].mxu0 %v747
        %v787 = vpop.f32.mrb[0].mxu0
        %v788 = vadd.f32 0.0, %v787
        %v789 = vpop.f32.mrb[0].mxu0
        %v790 = vpop.f32.mrb[0].mxu0
        %v791 = vpop.f32.mrb[0].mxu0
        %792 = vdwg.mxu0
        %v793 = vpack.c.bf16 %v788, %v788
        %vm794 = vcmask 60416
        %795 = vst.msk [vmem:[%s481] sm:$0xf] %vm794, %v793
        %p796 = scmp.lt.s32.totalorder %s28, 1
        %s797 = scalar_select %p796, %s28, 1
        %p798 = scmp.lt.s32.totalorder %s29, 3
        %s799 = scalar_select %p798, %s29, 3
        %s800 = smul.addr %s797, 4
        %s801 = sadd.s32 %s799, %s800
        %s802 = smul.addr %s801, 4
        %s803 = scalar_lea.vmem %s8, %s802
        %s804 = sand.u32 %s282, 1
        %s805 = scalar_lea.sflag [#allocation3], %s804
        %s806 = sand.u32 %s282, 1
        %s807 = smul.addr %s806, 8
        %s808 = scalar_lea.vmem [#allocation2], %s807
        // Predicated region
        $region53: #{cross_attention_forward.4} parent=51 // pred_check
          %p809 = pneg %p264
        $region54: #{cross_attention_forward.4} parent=51 // pred_check_branch
          %811 = sbr.rel (%p809) target = $region56
        $region55: #{cross_attention_forward.4} parent=51 // pred_region
          _
        $region56: #{cross_attention_forward.4} parent=51 // pred_fallthru
          _
        // Predicated region
        $region57: #{cross_attention_forward.4} parent=51 // pred_check
          %p812 = pneg %p292
        $region58: #{cross_attention_forward.4} parent=51 // pred_check_branch
          %814 = sbr.rel (%p812) target = $region60
        $region59: #{cross_attention_forward.4} parent=51 // pred_region
          %s816 = ssub.s32 128, 128
          %817 = vsyncadd %s805, %s816
          %s818 = smul.addr %s28, 4
          %s819 = sadd.s32 %s29, %s818
          %s820 = smul.addr %s819, 128
          %s821 = scalar_lea.hbm %s9, %s820
          %s823 = sshll.u32 %s808, 4
          %s824 = int_to_ptr.vmem [resolvable:$true] %s823
          %826 = dma.vmem_to_hbm [thread:$0]  %s824, 128, %s821, %s805
        $region60: #{cross_attention_forward.4} parent=51 // pred_fallthru
          _
      $region52: #{cross_attention_forward.4} parent=5 // pred_fallthru
        _
      %p827 = scmp.le.s32.totalorder 2, %s19
      // Predicated region
      $region61: #{cross_attention_forward.4} parent=5 // pred_check
        %p828 = pneg %p827
      $region62: #{cross_attention_forward.4} parent=5 // pred_check_branch
        %830 = sbr.rel (%p828) target = $region64
      $region63: #{cross_attention_forward.4} parent=5 // pred_region
        %s831 = ssub.s32 %s19, 2
        // Predicated region
        $region65: #{cross_attention_forward.4} parent=63 // pred_check
          %p832 = pneg %p270
        $region66: #{cross_attention_forward.4} parent=63 // pred_check_branch
          %834 = sbr.rel (%p832) target = $region68
        $region67: #{cross_attention_forward.4} parent=63 // pred_region
          %p835 = scmp.lt.s32.totalorder %s30, 1
          %s836 = scalar_select %p835, %s30, 1
          %p837 = scmp.lt.s32.totalorder %s31, 3
          %s838 = scalar_select %p837, %s31, 3
          %s839 = smul.addr %s836, 4
          %s840 = sadd.s32 %s838, %s839
          %s841 = smul.addr %s840, 4
          %s842 = scalar_lea.vmem %s8, %s841
        $region68: #{cross_attention_forward.4} parent=63 // pred_fallthru
          _
        // Predicated region
        $region69: #{cross_attention_forward.4} parent=63 // pred_check
          %p843 = pneg %p298
        $region70: #{cross_attention_forward.4} parent=63 // pred_check_branch
          %845 = sbr.rel (%p843) target = $region72
        $region71: #{cross_attention_forward.4} parent=63 // pred_region
          %s846 = sand.u32 %s283, 1
          %s847 = scalar_lea.sflag [#allocation3], %s846
          %s848 = sand.u32 %s283, 1
          %s849 = smul.addr %s848, 8
          %s850 = scalar_lea.vmem [#allocation2], %s849
          %851 = dma.done %s847, 128
        $region72: #{cross_attention_forward.4} parent=63 // pred_fallthru
          _
      $region64: #{cross_attention_forward.4} parent=5 // pred_fallthru
        _
    $region6: #{cross_attention_forward.4} parent=1 // loop_footer
      %s23 = sadd.s32 1, %s19
    $region7: #{cross_attention_forward.4} parent=1 // loop_footer_branch
      %18 = sbr.rel target = $region3
    $region8: #{cross_attention_forward.4} parent=1 // loop_exit
      _
    %852 = vsyncpa [#allocation3], 1
    %s853 = scalar_lea.sflag [#allocation3], 1
    %854 = vsyncpa %s853, 1

// kernel: cross_attention_forward.5
$region0: #{cross_attention_forward.5}
  #allocation0 [shape = 'u32[]', space=smem, size = 0x4, offset = 0x4, fixed_abs, tag = 'smem constant byte address 0x4 - core index']
  #allocation1 [shape = 'u32[144,128]{1,0:T(1,128)}', space=vmem, size = 0x12000, scoped, tag = 'internal scratch']
  %s0 = inlined_call_operand.vmem [shape: bf16[16,32], index: 0, kind: input, shape index: {}]
  %s1 = inlined_call_operand.vmem [shape: f32[16,32], index: 1, kind: input, shape index: {}]
  %s2 = inlined_call_operand.vmem [shape: bf16[32,32], index: 2, kind: input, shape index: {}]
  %s3 = inlined_call_operand.vmem [shape: f32[1,32], index: 3, kind: input, shape index: {}]
  %s4 = inlined_call_operand.vmem [shape: f32[1,32], index: 4, kind: input, shape index: {}]
  %s5 = inlined_call_operand.vmem [shape: f32[1,32], index: 5, kind: input, shape index: {}]
  %s6 = inlined_call_operand.vmem [shape: bf16[32,64], index: 6, kind: input, shape index: {}]
  %s7 = inlined_call_operand.vmem [shape: f32[1,64], index: 7, kind: input, shape index: {}]
  %s8 = inlined_call_operand.vmem [shape: bf16[64,32], index: 8, kind: input, shape index: {}]
  %s9 = inlined_call_operand.vmem [shape: f32[1,32], index: 9, kind: input, shape index: {}]
  %s10 = inlined_call_operand.vmem [shape: f32[1,32], index: 10, kind: input, shape index: {}]
  %s11 = inlined_call_operand.vmem [shape: f32[1,32], index: 11, kind: input, shape index: {}]
  %s12 = inlined_call_operand.hbm [shape: f32[16,32], index: 12, kind: output, shape index: {}]
  %s13 = sld [smem:[#allocation0]]
  $region58: #{cross_attention_forward.5} parent=0
    _
  %s15 = ssub.s32 1, %s13
  %s16 = scalar_select 0, %s15, %s13
  $region1: #{cross_attention_forward.5} parent=0
    #allocation2 [shape = 'u8[8192]{0}', space=vmem, size = 0x2000, scoped, tag = 'output window, operand 0, single buffered']
    #allocation3 [shape = 's32[1]{0}', space=sflag, size = 0x4, scoped, tag = 'scoped memory for cross_attention_forward.5']
    %17 = vsyncpa [#allocation3], 0
    // Predicated region
    $region2: #{cross_attention_forward.5} parent=1 // pred_check
      _
    $region3: #{cross_attention_forward.5} parent=1 // pred_check_branch
      %19 = sbr.rel (0) target = $region5
    $region4: #{cross_attention_forward.5} parent=1 // pred_region
      _
    $region5: #{cross_attention_forward.5} parent=1 // pred_fallthru
      _
    // Predicated region
    $region6: #{cross_attention_forward.5} parent=1 // pred_check
      _
    $region7: #{cross_attention_forward.5} parent=1 // pred_check_branch
      %21 = sbr.rel (0) target = $region9
    $region8: #{cross_attention_forward.5} parent=1 // pred_region
      _
    $region9: #{cross_attention_forward.5} parent=1 // pred_fallthru
      _
    // Predicated region
    $region10: #{cross_attention_forward.5} parent=1 // pred_check
      _
    $region11: #{cross_attention_forward.5} parent=1 // pred_check_branch
      %23 = sbr.rel (0) target = $region13
    $region12: #{cross_attention_forward.5} parent=1 // pred_region
      _
    $region13: #{cross_attention_forward.5} parent=1 // pred_fallthru
      _
    // Predicated region
    $region14: #{cross_attention_forward.5} parent=1 // pred_check
      _
    $region15: #{cross_attention_forward.5} parent=1 // pred_check_branch
      %25 = sbr.rel (0) target = $region17
    $region16: #{cross_attention_forward.5} parent=1 // pred_region
      _
    $region17: #{cross_attention_forward.5} parent=1 // pred_fallthru
      _
    // Predicated region
    $region18: #{cross_attention_forward.5} parent=1 // pred_check
      _
    $region19: #{cross_attention_forward.5} parent=1 // pred_check_branch
      %27 = sbr.rel (0) target = $region21
    $region20: #{cross_attention_forward.5} parent=1 // pred_region
      _
    $region21: #{cross_attention_forward.5} parent=1 // pred_fallthru
      _
    // Predicated region
    $region22: #{cross_attention_forward.5} parent=1 // pred_check
      _
    $region23: #{cross_attention_forward.5} parent=1 // pred_check_branch
      %29 = sbr.rel (0) target = $region25
    $region24: #{cross_attention_forward.5} parent=1 // pred_region
      _
    $region25: #{cross_attention_forward.5} parent=1 // pred_fallthru
      _
    // Predicated region
    $region26: #{cross_attention_forward.5} parent=1 // pred_check
      _
    $region27: #{cross_attention_forward.5} parent=1 // pred_check_branch
      %31 = sbr.rel (0) target = $region29
    $region28: #{cross_attention_forward.5} parent=1 // pred_region
      _
    $region29: #{cross_attention_forward.5} parent=1 // pred_fallthru
      _
    // Predicated region
    $region30: #{cross_attention_forward.5} parent=1 // pred_check
      _
    $region31: #{cross_attention_forward.5} parent=1 // pred_check_branch
      %33 = sbr.rel (0) target = $region33
    $region32: #{cross_attention_forward.5} parent=1 // pred_region
      _
    $region33: #{cross_attention_forward.5} parent=1 // pred_fallthru
      _
    // Predicated region
    $region34: #{cross_attention_forward.5} parent=1 // pred_check
      _
    $region35: #{cross_attention_forward.5} parent=1 // pred_check_branch
      %35 = sbr.rel (0) target = $region37
    $region36: #{cross_attention_forward.5} parent=1 // pred_region
      _
    $region37: #{cross_attention_forward.5} parent=1 // pred_fallthru
      _
    // Predicated region
    $region38: #{cross_attention_forward.5} parent=1 // pred_check
      _
    $region39: #{cross_attention_forward.5} parent=1 // pred_check_branch
      %37 = sbr.rel (0) target = $region41
    $region40: #{cross_attention_forward.5} parent=1 // pred_region
      _
    $region41: #{cross_attention_forward.5} parent=1 // pred_fallthru
      _
    // Predicated region
    $region42: #{cross_attention_forward.5} parent=1 // pred_check
      _
    $region43: #{cross_attention_forward.5} parent=1 // pred_check_branch
      %39 = sbr.rel (0) target = $region45
    $region44: #{cross_attention_forward.5} parent=1 // pred_region
      _
    $region45: #{cross_attention_forward.5} parent=1 // pred_fallthru
      _
    // Predicated region
    $region46: #{cross_attention_forward.5} parent=1 // pred_check
      _
    $region47: #{cross_attention_forward.5} parent=1 // pred_check_branch
      %41 = sbr.rel (0) target = $region49
    $region48: #{cross_attention_forward.5} parent=1 // pred_region
      _
    $region49: #{cross_attention_forward.5} parent=1 // pred_fallthru
      _
    %v43 = vld [vmem:[%s0] sm:$0xf]
    %v44 = vld [vmem:[%s0 + $0x4] sm:$0xf]
    %v45 = vld [vmem:[%s2] sm:$0xf]
    %v46 = vld [vmem:[%s2 + $0x4] sm:$0xf]
    %v47 = vld [vmem:[%s2 + $0x8] sm:$0xf]
    %v48 = vld [vmem:[%s2 + $0xc] sm:$0xf]
    %v49 = vld [vmem:[%s3] sm:$0x1]
    %v51 = vlaneseq
    %v52 = vshrl.u32 %v51, 7
    %v53 = vsub.s32 0, %v52
    %v54 = vrot.slane %v49, %v53
    %v58 = vunpack.c.l.b16 %v43
    %v59 = vunpack.c.l.b16 %v44
    %v60 = vpack.c.b16 %v59, %v58
    %v65 = vunpack.c.l.b16 %v45
    %v66 = vunpack.c.l.b16 %v46
    %v67 = vunpack.c.l.b16 %v47
    %v68 = vunpack.c.l.b16 %v48
    %v69 = vpack.c.b16 %v66, %v65
    %v70 = vpack.c.b16 %v68, %v67
    %vm73 = vcmask 261120
    %v75 = vsel %vm73, %v60, 0
    %77 = vmatprep.subr.bf16.mxu0 0
    %78 = vmatpush1.bf16.msra.mxu0 %v69
    %79 = vmatprep.subr.bf16.mxu0 0
    %80 = vmatpush1.bf16.msra.mxu0 %v70
    %81 = vmatprep.subr.bf16.mxu0 0
    %82 = vmatpush1.bf16.msra.mxu0 0
    %83 = vmatprep.subr.bf16.mxu0 0
    %84 = vmatpush1.bf16.msra.mxu0 0
    %85 = vmatprep.subr.bf16.mxu0 0
    %86 = vmatpush1.bf16.msra.mxu0 0
    %87 = vmatprep.subr.bf16.mxu0 0
    %88 = vmatpush1.bf16.msra.mxu0 0
    %89 = vmatprep.subr.bf16.mxu0 0
    %90 = vmatpush1.bf16.msra.mxu0 0
    %91 = vmatprep.subr.bf16.mxu0 0
    %92 = vmatpush1.bf16.msra.mxu0 0
    %93 = vmatprep.subr.bf16.mxu0 0
    %94 = vmatpush1.bf16.msra.mxu0 0
    %95 = vmatprep.subr.bf16.mxu0 0
    %96 = vmatpush1.bf16.msra.mxu0 0
    %97 = vmatprep.subr.bf16.mxu0 0
    %98 = vmatpush1.bf16.msra.mxu0 0
    %99 = vmatprep.subr.bf16.mxu0 0
    %100 = vmatpush1.bf16.msra.mxu0 0
    %101 = vmatprep.subr.bf16.mxu0 0
    %102 = vmatpush1.bf16.msra.mxu0 0
    %103 = vmatprep.subr.bf16.mxu0 0
    %104 = vmatpush1.bf16.msra.mxu0 0
    %105 = vmatprep.subr.bf16.mxu0 0
    %106 = vmatpush1.bf16.msra.mxu0 0
    %107 = vmatprep.subr.bf16.mxu0 0
    %108 = vmatpush1.bf16.msra.mxu0 0
    %109 = vmatprep.mubr.bf16.mxu0 0
    %110 = vmatmul.mubr.bf16.gmra.mrb[0].mxu0 %v75
    %v111 = vpop.f32.mrb[0].mxu0
    %v112 = vadd.f32 %v54, %v111
    %v113 = vpop.f32.mrb[0].mxu0
    %v114 = vpop.f32.mrb[0].mxu0
    %v115 = vadd.f32 %v54, %v114
    %v116 = vpop.f32.mrb[0].mxu0
    %117 = vdwg.mxu0
    %v118 = vld [vmem:[%s1] sm:$0xff]
    %v119 = vld [vmem:[%s1 + $0x8] sm:$0xff]
    %v120 = vadd.f32 %v112, %v118
    %v121 = vadd.f32 %v115, %v119
    %v122 = vsel %vm73, %v120, 0.0
    %123 = vadd.xlane.f32.xlu0 %v122
    %v124 = vpop.xlane.xlu0 %123
    %v125 = vsel %vm73, %v121, 0.0
    %126 = vadd.xlane.f32.xlu0 %v125
    %v127 = vpop.xlane.xlu0 %126
    %v128 = vrcp.pop 32.0
    %v129 = vmul.f32 %v124, %v128
    %v130 = vmul.f32 %v127, %v128
    %v131 = vsub.f32 %v120, %v129
    %v132 = vsub.f32 %v121, %v130
    %v133 = vmul.f32 %v131, %v131
    %v134 = vmul.f32 %v132, %v132
    %v135 = vsel %vm73, %v133, 0.0
    %136 = vadd.xlane.f32.xlu0 %v135
    %v137 = vpop.xlane.xlu0 %136
    %v138 = vsel %vm73, %v134, 0.0
    %139 = vadd.xlane.f32.xlu0 %v138
    %v140 = vpop.xlane.xlu0 %139
    %v141 = vmul.f32 %v137, %v128
    %v142 = vmul.f32 %v140, %v128
    %v143 = vadd.f32 %v141, 1e-05
    %v144 = vadd.f32 %v142, 1e-05
    %v145 = vrsqrt.pop %v143
    %v146 = vrsqrt.pop %v144
    %v147 = vmul.f32 %v131, %v145
    %v148 = vmul.f32 %v132, %v146
    %v149 = vld [vmem:[%s4] sm:$0x1]
    %v151 = vlaneseq
    %v152 = vshrl.u32 %v151, 7
    %v153 = vsub.s32 0, %v152
    %v154 = vrot.slane %v149, %v153
    %v156 = vmul.f32 %v147, %v154
    %v157 = vmul.f32 %v148, %v154
    %v158 = vld [vmem:[%s5] sm:$0x1]
    %v160 = vlaneseq
    %v161 = vshrl.u32 %v160, 7
    %v162 = vsub.s32 0, %v161
    %v163 = vrot.slane %v158, %v162
    %v165 = vadd.f32 %v156, %v163
    %v166 = vadd.f32 %v157, %v163
    %v167 = vpack.c.bf16 %v166, %v165
    %v168 = vld [vmem:[%s6] sm:$0xf]
    %v169 = vld [vmem:[%s6 + $0x4] sm:$0xf]
    %v170 = vld [vmem:[%s6 + $0x8] sm:$0xf]
    %v171 = vld [vmem:[%s6 + $0xc] sm:$0xf]
    %v172 = vld [vmem:[%s7] sm:$0x1]
    %v174 = vlaneseq
    %v175 = vshrl.u32 %v174, 7
    %v176 = vsub.s32 0, %v175
    %v177 = vrot.slane %v172, %v176
    %v183 = vunpack.c.l.b16 %v168
    %v184 = vunpack.c.l.b16 %v169
    %v185 = vunpack.c.l.b16 %v170
    %v186 = vunpack.c.l.b16 %v171
    %v187 = vpack.c.b16 %v184, %v183
    %v188 = vpack.c.b16 %v186, %v185
    %v192 = vsel %vm73, %v167, 0
    %194 = vmatprep.subr.bf16.mxu0 0
    %195 = vmatpush1.bf16.msra.mxu0 %v187
    %196 = vmatprep.subr.bf16.mxu0 0
    %197 = vmatpush1.bf16.msra.mxu0 %v188
    %198 = vmatprep.subr.bf16.mxu0 0
    %199 = vmatpush1.bf16.msra.mxu0 0
    %200 = vmatprep.subr.bf16.mxu0 0
    %201 = vmatpush1.bf16.msra.mxu0 0
    %202 = vmatprep.subr.bf16.mxu0 0
    %203 = vmatpush1.bf16.msra.mxu0 0
    %204 = vmatprep.subr.bf16.mxu0 0
    %205 = vmatpush1.bf16.msra.mxu0 0
    %206 = vmatprep.subr.bf16.mxu0 0
    %207 = vmatpush1.bf16.msra.mxu0 0
    %208 = vmatprep.subr.bf16.mxu0 0
    %209 = vmatpush1.bf16.msra.mxu0 0
    %210 = vmatprep.subr.bf16.mxu0 0
    %211 = vmatpush1.bf16.msra.mxu0 0
    %212 = vmatprep.subr.bf16.mxu0 0
    %213 = vmatpush1.bf16.msra.mxu0 0
    %214 = vmatprep.subr.bf16.mxu0 0
    %215 = vmatpush1.bf16.msra.mxu0 0
    %216 = vmatprep.subr.bf16.mxu0 0
    %217 = vmatpush1.bf16.msra.mxu0 0
    %218 = vmatprep.subr.bf16.mxu0 0
    %219 = vmatpush1.bf16.msra.mxu0 0
    %220 = vmatprep.subr.bf16.mxu0 0
    %221 = vmatpush1.bf16.msra.mxu0 0
    %222 = vmatprep.subr.bf16.mxu0 0
    %223 = vmatpush1.bf16.msra.mxu0 0
    %224 = vmatprep.subr.bf16.mxu0 0
    %225 = vmatpush1.bf16.msra.mxu0 0
    %226 = vmatprep.mubr.bf16.mxu0 0
    %227 = vmatmul.mubr.bf16.gmra.mrb[0].mxu0 %v192
    %v228 = vpop.f32.mrb[0].mxu0
    %v229 = vadd.f32 %v177, %v228
    %v230 = vpop.f32.mrb[0].mxu0
    %v231 = vpop.f32.mrb[0].mxu0
    %v232 = vadd.f32 %v177, %v231
    %v233 = vpop.f32.mrb[0].mxu0
    %234 = vdwg.mxu0
    %vm235 = vcmp.ge.f32.partialorder %v229, 0.0
    %vm236 = vcmp.ge.f32.partialorder %v232, 0.0
    %v237 = vmul.f32 %v229, 0.2
    %v238 = vmul.f32 %v232, 0.2
    %v239 = vsel %vm235, %v229, %v237
    %v240 = vsel %vm236, %v232, %v238
    %v241 = vpack.c.bf16 %v240, %v239
    %v242 = vld [vmem:[%s8] sm:$0xf]
    %v243 = vld [vmem:[%s8 + $0x4] sm:$0xf]
    %v244 = vld [vmem:[%s8 + $0x8] sm:$0xf]
    %v245 = vld [vmem:[%s8 + $0xc] sm:$0xf]
    %v246 = vld [vmem:[%s8 + $0x10] sm:$0xf]
    %v247 = vld [vmem:[%s8 + $0x14] sm:$0xf]
    %v248 = vld [vmem:[%s8 + $0x18] sm:$0xf]
    %v249 = vld [vmem:[%s8 + $0x1c] sm:$0xf]
    %v250 = vld [vmem:[%s9] sm:$0x1]
    %v252 = vlaneseq
    %v253 = vshrl.u32 %v252, 7
    %v254 = vsub.s32 0, %v253
    %v255 = vrot.slane %v250, %v254
    %v265 = vunpack.c.l.b16 %v242
    %v266 = vunpack.c.l.b16 %v243
    %v267 = vunpack.c.l.b16 %v244
    %v268 = vunpack.c.l.b16 %v245
    %v269 = vunpack.c.l.b16 %v246
    %v270 = vunpack.c.l.b16 %v247
    %v271 = vunpack.c.l.b16 %v248
    %v272 = vunpack.c.l.b16 %v249
    %v273 = vpack.c.b16 %v266, %v265
    %v274 = vpack.c.b16 %v268, %v267
    %v275 = vpack.c.b16 %v270, %v269
    %v276 = vpack.c.b16 %v272, %v271
    %vm281 = vcmask 523264
    %v283 = vsel %vm281, %v241, 0
    %285 = vmatprep.subr.bf16.mxu0 0
    %286 = vmatpush1.bf16.msra.mxu0 %v273
    %287 = vmatprep.subr.bf16.mxu0 0
    %288 = vmatpush1.bf16.msra.mxu0 %v274
    %289 = vmatprep.subr.bf16.mxu0 0
    %290 = vmatpush1.bf16.msra.mxu0 %v275
    %291 = vmatprep.subr.bf16.mxu0 0
    %292 = vmatpush1.bf16.msra.mxu0 %v276
    %293 = vmatprep.subr.bf16.mxu0 0
    %294 = vmatpush1.bf16.msra.mxu0 0
    %295 = vmatprep.subr.bf16.mxu0 0
    %296 = vmatpush1.bf16.msra.mxu0 0
    %297 = vmatprep.subr.bf16.mxu0 0
    %298 = vmatpush1.bf16.msra.mxu0 0
    %299 = vmatprep.subr.bf16.mxu0 0
    %300 = vmatpush1.bf16.msra.mxu0 0
    %301 = vmatprep.subr.bf16.mxu0 0
    %302 = vmatpush1.bf16.msra.mxu0 0
    %303 = vmatprep.subr.bf16.mxu0 0
    %304 = vmatpush1.bf16.msra.mxu0 0
    %305 = vmatprep.subr.bf16.mxu0 0
    %306 = vmatpush1.bf16.msra.mxu0 0
    %307 = vmatprep.subr.bf16.mxu0 0
    %308 = vmatpush1.bf16.msra.mxu0 0
    %309 = vmatprep.subr.bf16.mxu0 0
    %310 = vmatpush1.bf16.msra.mxu0 0
    %311 = vmatprep.subr.bf16.mxu0 0
    %312 = vmatpush1.bf16.msra.mxu0 0
    %313 = vmatprep.subr.bf16.mxu0 0
    %314 = vmatpush1.bf16.msra.mxu0 0
    %315 = vmatprep.subr.bf16.mxu0 0
    %316 = vmatpush1.bf16.msra.mxu0 0
    %317 = vmatprep.mubr.bf16.mxu0 0
    %318 = vmatmul.mubr.bf16.gmra.mrb[0].mxu0 %v283
    %v319 = vpop.f32.mrb[0].mxu0
    %v320 = vadd.f32 %v255, %v319
    %v321 = vpop.f32.mrb[0].mxu0
    %v322 = vpop.f32.mrb[0].mxu0
    %v323 = vadd.f32 %v255, %v322
    %v324 = vpop.f32.mrb[0].mxu0
    %325 = vdwg.mxu0
    %vm326 = vcmp.ge.f32.partialorder %v320, 0.0
    %vm327 = vcmp.ge.f32.partialorder %v323, 0.0
    %v328 = vmul.f32 %v320, 0.2
    %v329 = vmul.f32 %v323, 0.2
    %v330 = vsel %vm326, %v320, %v328
    %v331 = vsel %vm327, %v323, %v329
    %v332 = vsel %vm73, %v330, 0.0
    %333 = vadd.xlane.f32.xlu0 %v332
    %v334 = vpop.xlane.xlu0 %333
    %v335 = vsel %vm73, %v331, 0.0
    %336 = vadd.xlane.f32.xlu0 %v335
    %v337 = vpop.xlane.xlu0 %336
    %v338 = vmul.f32 %v334, %v128
    %v339 = vmul.f32 %v337, %v128
    %v340 = vsub.f32 %v330, %v338
    %v341 = vsub.f32 %v331, %v339
    %v342 = vmul.f32 %v340, %v340
    %v343 = vmul.f32 %v341, %v341
    %v344 = vsel %vm73, %v342, 0.0
    %345 = vadd.xlane.f32.xlu0 %v344
    %v346 = vpop.xlane.xlu0 %345
    %v347 = vsel %vm73, %v343, 0.0
    %348 = vadd.xlane.f32.xlu0 %v347
    %v349 = vpop.xlane.xlu0 %348
    %v350 = vmul.f32 %v346, %v128
    %v351 = vmul.f32 %v349, %v128
    %v352 = vadd.f32 %v350, 1e-05
    %v353 = vadd.f32 %v351, 1e-05
    %v354 = vrsqrt.pop %v352
    %v355 = vrsqrt.pop %v353
    %v356 = vmul.f32 %v340, %v354
    %v357 = vmul.f32 %v341, %v355
    %v358 = vld [vmem:[%s10] sm:$0x1]
    %v360 = vlaneseq
    %v361 = vshrl.u32 %v360, 7
    %v362 = vsub.s32 0, %v361
    %v363 = vrot.slane %v358, %v362
    %v365 = vmul.f32 %v356, %v363
    %v366 = vmul.f32 %v357, %v363
    %v367 = vld [vmem:[%s11] sm:$0x1]
    %v369 = vlaneseq
    %v370 = vshrl.u32 %v369, 7
    %v371 = vsub.s32 0, %v370
    %v372 = vrot.slane %v367, %v371
    %v374 = vadd.f32 %v365, %v372
    %v375 = vadd.f32 %v366, %v372
    %376 = vst.msk [vmem:[#allocation2] sm:$0xff] %vm73, %v374
    %377 = vst.msk [vmem:[#allocation2 + $0x8] sm:$0xff] %vm73, %v375
    // Predicated region
    $region50: #{cross_attention_forward.5} parent=1 // pred_check
      _
    $region51: #{cross_attention_forward.5} parent=1 // pred_check_branch
      %379 = sbr.rel (0) target = $region53
    $region52: #{cross_attention_forward.5} parent=1 // pred_region
      %s381 = ssub.s32 256, 256
      %382 = vsyncadd [#allocation3], %s381
      %s383 = sshll.u32 [#allocation2], 4
      %s384 = int_to_ptr.vmem [resolvable:$true] %s383
      %389 = dma.vmem_to_hbm [thread:$0]  %s384, 256, %s12, [#allocation3], 128, 128, 8
    $region53: #{cross_attention_forward.5} parent=1 // pred_fallthru
      _
    // Predicated region
    $region54: #{cross_attention_forward.5} parent=1 // pred_check
      _
    $region55: #{cross_attention_forward.5} parent=1 // pred_check_branch
      %391 = sbr.rel (0) target = $region57
    $region56: #{cross_attention_forward.5} parent=1 // pred_region
      %392 = dma.done [#allocation3], 256
    $region57: #{cross_attention_forward.5} parent=1 // pred_fallthru
      _
    %393 = vsyncpa [#allocation3], 1

</llo_original>
